<compile_context>
chip_gen: v7x
topology: tpu7x:2x2x1
jax: 0.10.0
libtpu: 0.0.40
codegen_flags: <defaults>
</compile_context>

<pallas_src>
import functools

import jax
import jax.numpy as jnp
import numpy as np
from jax import lax
from jax.experimental import pallas as pl
from jax.experimental.pallas import tpu as pltpu


def _round_up(x, m):
    return (x + m - 1) // m * m


def _phase_start(k, s):
    """For 3x3 tap offset k in {0,1,2} and stride s, return (phase, start).

    With the conv-a activation stored stride-phase-major (each phase padded by
    one leading and one trailing zero slot), the positions tap k reads are the
    contiguous range [start, start + out_extent) inside phase `phase`.
    """
    p = (k - 1) % s
    start = 1 + (k - 1) // s
    return p, start


def _block_kernel(x_ref, wa_ref, wb_ref, wc_ref, bias_ref, out_ref, pad_ref,
                  *, stride):
    """Fused Block forward for one batch tile.

    x_ref   : (Bblk, H, W, Cin)  bf16, stride-phase-major spatial layout
              (row hp*Ho+ho <-> original row stride*ho+hp; same for columns).
    wa_ref  : (Cin, Cin)          bf16, 1x1 conv 'a' weight as (in, out).
    wb_ref  : (9*Cin, Cin)        bf16, block-diagonal dense 3x3 tap weights,
                                  rows ordered tap-major (tap = 3*ky + kx).
    wc_ref  : (Cin, Cout)         bf16, 1x1 conv 'c' weight, BN scale folded in.
    bias_ref: (1, Cout)           f32, folded BN bias.
    out_ref : (Bblk, Ho*Wo, Cout) f32, strided output (lane-dense slab).
    pad_ref : (Bblk, s*(Ho+2), s*(Wo+2), Cin) f32 scratch holding the conv-a
              activations per stride-phase with a 1-slot zero border.
    """
    s = stride
    Bblk, H, W, Cin = x_ref.shape
    Cout = out_ref.shape[-1]
    Ho, Wo = H // s, W // s
    hpad, wpad = Ho + 2, Wo + 2
    n_in = Bblk * H * W
    n_out = Bblk * Ho * Wo

    # ---- conv a: 1x1 (no bias) + ReLU.  One bf16 MXU matmul, f32 accumulate.
    ya = jnp.maximum(
        jnp.dot(x_ref[...].reshape(n_in, Cin), wa_ref[...],
                preferred_element_type=jnp.float32),
        0.0)
    ya = ya.reshape(Bblk, H, W, Cin)  # phase-major spatial order (same as x)

    # ---- zero only the thin 1-slot borders of the scratch (O(H+W) work).
    #      Re-done every grid step so correctness does not depend on which
    #      TensorCore ran step 0 (scratch is per-core resident).
    zrow = jnp.zeros((Bblk, 1, s * wpad, Cin), jnp.float32)
    zcol = jnp.zeros((Bblk, s * hpad, 1, Cin), jnp.float32)
    for p in range(s):
        pad_ref[:, p * hpad:p * hpad + 1, :, :] = zrow
        pad_ref[:, (p + 1) * hpad - 1:(p + 1) * hpad, :, :] = zrow
        pad_ref[:, :, p * wpad:p * wpad + 1, :] = zcol
        pad_ref[:, :, (p + 1) * wpad - 1:(p + 1) * wpad, :] = zcol

    # ---- scatter conv-a activations into the per-phase interiors.
    for hp in range(s):
        for wp in range(s):
            pad_ref[:, hp * hpad + 1:hp * hpad + 1 + Ho,
                    wp * wpad + 1:wp * wpad + 1 + Wo, :] = (
                ya[:, hp * Ho:(hp + 1) * Ho, wp * Wo:(wp + 1) * Wo, :])

    # ---- conv b: 3x3 grouped conv at the strided output positions.
    #      Materialize the 3 column (W-shifted) windows once, reuse them for
    #      the 3 ky taps, concatenate all 9 taps along channels and do ONE
    #      K = 9*Cin bf16 MXU matmul against the block-diagonal tap weights.
    col_wins = []
    for kx in range(3):
        wp, cs = _phase_start(kx, s)
        c0 = wp * wpad + cs
        col_wins.append(pad_ref[:, :, c0:c0 + Wo, :])   # (Bblk, s*hpad, Wo, Cin)
    taps = []
    for ky in range(3):
        hp, rs = _phase_start(ky, s)
        r0 = hp * hpad + rs
        for kx in range(3):
            taps.append(col_wins[kx][:, r0:r0 + Ho, :, :])   # (Bblk, Ho, Wo, Cin)
    xb = jnp.concatenate(taps, axis=-1)                      # (Bblk, Ho, Wo, 9*Cin)
    xb = xb.reshape(n_out, 9 * Cin).astype(wb_ref.dtype)
    yb = jnp.maximum(
        jnp.dot(xb, wb_ref[...], preferred_element_type=jnp.float32), 0.0)

    # ---- conv c: 1x1 with BN scale pre-folded into the weight; add BN bias.
    yc = jnp.dot(yb.astype(wc_ref.dtype), wc_ref[...],
                 preferred_element_type=jnp.float32)
    out_ref[...] = (yc + bias_ref[...]).reshape(Bblk, Ho * Wo, Cout)


def _vmem_estimate_bytes(Bblk, H, W, Ho, Wo, Cin, Cout, stride):
    """Rough per-step VMEM footprint (lane-padded, double-buffered I/O)."""
    lane = 128
    cin_p = _round_up(Cin, lane)
    cout_p = _round_up(Cout, lane)
    x_blk = Bblk * H * _round_up(W, 16) * cin_p * 2                  # bf16 in
    out_blk = Bblk * _round_up(Ho * Wo, 8) * cout_p * 4              # f32 out
    scratch = Bblk * stride * (Ho + 2) * _round_up(stride * (Wo + 2), 8) * cin_p * 4
    weights = (Cin * cin_p + 9 * Cin * cin_p + Cin * cout_p) * 2 + 8 * cout_p * 4
    work = Bblk * _round_up(Ho * Wo, 8) * _round_up(9 * Cin, lane) * 4  # conv-b input
    return 2 * (x_blk + out_blk) + scratch + 2 * weights + work


def _pick_batch_block(B, H, W, Ho, Wo, Cin, Cout, stride, budget=16 << 20):
    """Largest batch block that fits the VMEM budget while keeping >=2 grid
    steps (so both v7x TensorCores get work)."""
    best = 1
    for cand in range(1, B + 1):
        if B % cand:
            continue
        if B > 1 and B // cand < 2:
            continue
        if _vmem_estimate_bytes(cand, H, W, Ho, Wo, Cin, Cout, stride) > budget:
            continue
        best = max(best, cand)
    return best


def block_forward(x_nchw, wa, wb, wc, gamma, beta, running_mean, running_var,
                  *, eps, stride, gw, batch_block=None):
    """Equivalent of Block(w_in, w_out, stride, gw).forward(x) in eval mode.

    x_nchw: (B, w_in, H, W) float32 (NCHW, like PyTorch)
    wa    : (w_in, w_in, 1, 1)   conv 'a' weight
    wb    : (w_in, gw, 3, 3)     grouped conv 'b' weight (groups = w_in // gw)
    wc    : (w_out, w_in, 1, 1)  conv 'c' weight
    returns (B, w_out, H_out, W_out) float32 (NCHW)
    """
    B, Cin, H, W = x_nchw.shape
    Cout = wc.shape[0]
    assert Cin % gw == 0
    g = Cin // gw
    assert H % stride == 0 and W % stride == 0, "spatial dims must divide stride"
    Ho, Wo = H // stride, W // stride

    if batch_block is None:
        batch_block = _pick_batch_block(B, H, W, Ho, Wo, Cin, Cout, stride)
    Bblk = batch_block
    assert B % Bblk == 0

    # Layout glue (single transpose pass): NCHW -> channels-last with a
    # stride-phase-major spatial ordering, cast to bf16 for the MXU.
    #   x_ps[b, hp*Ho+ho, wp*Wo+wo, c] = x[b, c, stride*ho+hp, stride*wo+wp]
    x_ps = jnp.transpose(
        x_nchw.reshape(B, Cin, Ho, stride, Wo, stride),
        (0, 3, 2, 5, 4, 1)).reshape(B, H, W, Cin).astype(jnp.bfloat16)

    # 1x1 conv weights as (in, out) matmul matrices; fold BN (eval) scale into
    # conv-c's weight, keep only the bias for the kernel epilogue.
    wa_m = jnp.transpose(wa[:, :, 0, 0]).astype(jnp.bfloat16)          # (Cin, Cin)
    bn_scale = gamma / jnp.sqrt(running_var + eps)
    bn_bias = (beta - running_mean * bn_scale).astype(jnp.float32).reshape(1, Cout)
    wc_m = (jnp.transpose(wc[:, :, 0, 0]) * bn_scale[None, :]
            ).astype(jnp.bfloat16)                                     # (Cin, Cout)

    # Grouped 3x3 weights -> block-diagonal dense tap weights laid out as one
    # (9*Cin, Cin) matrix (rows tap-major, tap = 3*ky + kx) for a single
    # K = 9*Cin contraction.
    wb_r = wb.astype(jnp.float32).reshape(g, gw, gw, 3, 3)   # (grp, co_l, ci_l, ky, kx)
    taps = jnp.transpose(wb_r, (3, 4, 0, 2, 1)).reshape(9, g, gw, gw)  # (tap, grp, ci_l, co_l)
    eye_g = jnp.eye(g, dtype=jnp.float32)
    wb_cat = (taps[:, :, :, None, :] * eye_g[None, :, None, :, None]
              ).reshape(9 * Cin, Cin).astype(jnp.bfloat16)             # (9*Cin, Cin)

    # VMEM budgeting: only raise the scoped limit if the per-step footprint
    # needs it (stay well under v7x's 64 MiB physical VMEM).
    est = _vmem_estimate_bytes(Bblk, H, W, Ho, Wo, Cin, Cout, stride)
    cp_kwargs = dict(dimension_semantics=("parallel",))
    if est > (24 << 20):
        cp_kwargs["vmem_limit_bytes"] = int(min(est + (8 << 20), 60 << 20))

    kernel = functools.partial(_block_kernel, stride=stride)

    out_flat = pl.pallas_call(
        kernel,
        out_shape=jax.ShapeDtypeStruct((B, Ho * Wo, Cout), jnp.float32),
        grid=(B // Bblk,),
        in_specs=[
            pl.BlockSpec((Bblk, H, W, Cin), lambda b: (b, 0, 0, 0)),
            # Weight / bias blocks use a constant index so they are fetched
            # once and revisited on every grid step.
            pl.BlockSpec((Cin, Cin), lambda b: (0, 0)),
            pl.BlockSpec((9 * Cin, Cin), lambda b: (0, 0)),
            pl.BlockSpec((Cin, Cout), lambda b: (0, 0)),
            pl.BlockSpec((1, Cout), lambda b: (0, 0)),
        ],
        out_specs=pl.BlockSpec((Bblk, Ho * Wo, Cout), lambda b: (b, 0, 0)),
        scratch_shapes=[
            pltpu.VMEM((Bblk, stride * (Ho + 2), stride * (Wo + 2), Cin),
                       jnp.float32),
        ],
        compiler_params=pltpu.CompilerParams(**cp_kwargs),
    )(x_ps, wa_m, wb_cat, wc_m, bn_bias)

    # Lane-dense output slab -> NCHW to match the PyTorch module.
    out = out_flat.reshape(B, Ho, Wo, Cout)
    return jnp.transpose(out, (0, 3, 1, 2))


def _block_reference(x, wa, wb, wc, gamma, beta, running_mean, running_var,
                     *, eps, stride, gw):
    """Pure-JAX (XLA conv, f32) reference for verification, eval-mode BN."""
    g = x.shape[1] // gw
    dn = ("NCHW", "OIHW", "NCHW")
    ya = jax.nn.relu(lax.conv_general_dilated(
        x, wa, window_strides=(1, 1), padding="VALID",
        dimension_numbers=dn, precision=lax.Precision.HIGHEST))
    yb = jax.nn.relu(lax.conv_general_dilated(
        ya, wb, window_strides=(stride, stride), padding=((1, 1), (1, 1)),
        dimension_numbers=dn, feature_group_count=g,
        precision=lax.Precision.HIGHEST))
    yc = lax.conv_general_dilated(
        yb, wc, window_strides=(1, 1), padding="VALID",
        dimension_numbers=dn, precision=lax.Precision.HIGHEST)
    scale = gamma / jnp.sqrt(running_var + eps)
    bias = beta - running_mean * scale
    return yc * scale[None, :, None, None] + bias[None, :, None, None]


if __name__ == "__main__":
    w_in, w_out, stride, gw = 32, 64, 2, 8      # groups g = w_in // gw = 4
    B, H, W = 2, 16, 16
    eps = 1e-5

    key = jax.random.PRNGKey(0)
    ks = jax.random.split(key, 8)
    x = jax.random.normal(ks[0], (B, w_in, H, W), dtype=jnp.float32)
    wa = jax.random.normal(ks[1], (w_in, w_in, 1, 1), jnp.float32) / np.sqrt(w_in)
    wb = jax.random.normal(ks[2], (w_in, gw, 3, 3), jnp.float32) / np.sqrt(gw * 9)
    wc = jax.random.normal(ks[3], (w_out, w_in, 1, 1), jnp.float32) / np.sqrt(w_in)
    gamma = jax.random.uniform(ks[4], (w_out,), jnp.float32, 0.5, 1.5)
    beta = jax.random.normal(ks[5], (w_out,), jnp.float32) * 0.1
    rmean = jax.random.normal(ks[6], (w_out,), jnp.float32) * 0.1
    rvar = jax.random.uniform(ks[7], (w_out,), jnp.float32, 0.5, 1.5)

    # bf16 MXU inputs (f32 accumulation) -> compare against the f32 reference
    # with a correspondingly loosened tolerance.
    for s in (stride, 1):
        out = block_forward(x, wa, wb, wc, gamma, beta, rmean, rvar,
                            eps=eps, stride=s, gw=gw)
        out = jax.block_until_ready(out)
        ref = _block_reference(x, wa, wb, wc, gamma, beta, rmean, rvar,
                               eps=eps, stride=s, gw=gw)
        np.testing.assert_allclose(np.asarray(out), np.asarray(ref),
                                   rtol=5e-2, atol=5e-2)

    print("KERNEL_OK")
</pallas_src>

<mosaic_0001>
module attributes {stable_mosaic.version = 11 : i64} {
  func.func @_block_kernel(%arg0: i32, %arg1: memref<1x16x16x32xbf16, #tpu.memory_space<vmem>>, %arg2: memref<32x32xbf16, #tpu.memory_space<vmem>>, %arg3: memref<288x32xbf16, #tpu.memory_space<vmem>>, %arg4: memref<32x64xbf16, #tpu.memory_space<vmem>>, %arg5: memref<1x64xf32, #tpu.memory_space<vmem>>, %arg6: memref<1x64x64xf32, #tpu.memory_space<vmem>>, %arg7: memref<1x20x20x32xf32, #tpu.memory_space<vmem>>) attributes {dimension_semantics = [#tpu.dimension_semantics<parallel>], iteration_bounds = array<i64: 2>, scalar_prefetch = 0 : i64, scratch_operands = 1 : i64, tpu.core_type = #tpu.core_type<tc>, window_params = [{transform_indices = @transform_0, window_bounds = array<i64: 1, 16, 16, 32>}, {pipeline_mode = #tpu.pipeline_mode<synchronous>, transform_indices = @transform_1, window_bounds = array<i64: 32, 32>}, {pipeline_mode = #tpu.pipeline_mode<synchronous>, transform_indices = @transform_2, window_bounds = array<i64: 288, 32>}, {pipeline_mode = #tpu.pipeline_mode<synchronous>, transform_indices = @transform_3, window_bounds = array<i64: 32, 64>}, {pipeline_mode = #tpu.pipeline_mode<synchronous>, transform_indices = @transform_4, window_bounds = array<i64: 1, 64>}, {transform_indices = @transform_5, window_bounds = array<i64: 1, 64, 64>}]} {
    %c0 = arith.constant 0 : index
    %c0_0 = arith.constant 0 : index
    %c0_1 = arith.constant 0 : index
    %c0_2 = arith.constant 0 : index
    %0 = vector.load %arg1[%c0, %c0_0, %c0_1, %c0_2] : memref<1x16x16x32xbf16, #tpu.memory_space<vmem>>, vector<1x16x16x32xbf16>
    %1 = vector.shape_cast %0 : vector<1x16x16x32xbf16> to vector<256x32xbf16>
    %c0_3 = arith.constant 0 : index
    %c0_4 = arith.constant 0 : index
    %2 = vector.load %arg2[%c0_3, %c0_4] : memref<32x32xbf16, #tpu.memory_space<vmem>>, vector<32x32xbf16>
    %cst = arith.constant dense<0.000000e+00> : vector<256x32xf32>
    %3 = tpu.matmul %1, %2, %cst {dimension_numbers = #tpu.dot_dimension_numbers<[1], [0], [0], [1], [0, 0, 1, 1], [], []>} : vector<256x32xbf16>, vector<32x32xbf16>, vector<256x32xf32> -> vector<256x32xf32>
    %cst_5 = arith.constant 0.000000e+00 : f32
    %4 = vector.broadcast %cst_5 : f32 to vector<256x32xf32>
    %5 = arith.maximumf %3, %4 : vector<256x32xf32>
    %6 = vector.shape_cast %5 : vector<256x32xf32> to vector<1x16x16x32xf32>
    %cst_6 = arith.constant 0.000000e+00 : f32
    %7 = vector.broadcast %cst_6 : f32 to vector<1x1x20x32xf32>
    %cst_7 = arith.constant 0.000000e+00 : f32
    %8 = vector.broadcast %cst_7 : f32 to vector<1x20x1x32xf32>
    %c0_8 = arith.constant 0 : index
    %c0_9 = arith.constant 0 : index
    %c0_10 = arith.constant 0 : index
    %c0_11 = arith.constant 0 : index
    %9 = vector.load %arg7[%c0_8, %c0_9, %c0_10, %c0_11] : memref<1x20x20x32xf32, #tpu.memory_space<vmem>>, vector<1x1x20x32xf32>
    tpu.vector_store %arg7[%c0_8, %c0_9, %c0_10, %c0_11], %7 {strides = array<i32>} : memref<1x20x20x32xf32, #tpu.memory_space<vmem>>, vector<1x1x20x32xf32>,
    %c0_12 = arith.constant 0 : index
    %c9 = arith.constant 9 : index
    %c0_13 = arith.constant 0 : index
    %c0_14 = arith.constant 0 : index
    %10 = vector.load %arg7[%c0_12, %c9, %c0_13, %c0_14] : memref<1x20x20x32xf32, #tpu.memory_space<vmem>>, vector<1x1x20x32xf32>
    tpu.vector_store %arg7[%c0_12, %c9, %c0_13, %c0_14], %7 {strides = array<i32>} : memref<1x20x20x32xf32, #tpu.memory_space<vmem>>, vector<1x1x20x32xf32>,
    %c0_15 = arith.constant 0 : index
    %c0_16 = arith.constant 0 : index
    %c0_17 = arith.constant 0 : index
    %c0_18 = arith.constant 0 : index
    %11 = vector.load %arg7[%c0_15, %c0_16, %c0_17, %c0_18] : memref<1x20x20x32xf32, #tpu.memory_space<vmem>>, vector<1x20x1x32xf32>
    tpu.vector_store %arg7[%c0_15, %c0_16, %c0_17, %c0_18], %8 {strides = array<i32>} : memref<1x20x20x32xf32, #tpu.memory_space<vmem>>, vector<1x20x1x32xf32>,
    %c0_19 = arith.constant 0 : index
    %c0_20 = arith.constant 0 : index
    %c9_21 = arith.constant 9 : index
    %c0_22 = arith.constant 0 : index
    %12 = vector.load %arg7[%c0_19, %c0_20, %c9_21, %c0_22] : memref<1x20x20x32xf32, #tpu.memory_space<vmem>>, vector<1x20x1x32xf32>
    tpu.vector_store %arg7[%c0_19, %c0_20, %c9_21, %c0_22], %8 {strides = array<i32>} : memref<1x20x20x32xf32, #tpu.memory_space<vmem>>, vector<1x20x1x32xf32>,
    %c0_23 = arith.constant 0 : index
    %c10 = arith.constant 10 : index
    %c0_24 = arith.constant 0 : index
    %c0_25 = arith.constant 0 : index
    %13 = vector.load %arg7[%c0_23, %c10, %c0_24, %c0_25] : memref<1x20x20x32xf32, #tpu.memory_space<vmem>>, vector<1x1x20x32xf32>
    tpu.vector_store %arg7[%c0_23, %c10, %c0_24, %c0_25], %7 {strides = array<i32>} : memref<1x20x20x32xf32, #tpu.memory_space<vmem>>, vector<1x1x20x32xf32>,
    %c0_26 = arith.constant 0 : index
    %c19 = arith.constant 19 : index
    %c0_27 = arith.constant 0 : index
    %c0_28 = arith.constant 0 : index
    %14 = vector.load %arg7[%c0_26, %c19, %c0_27, %c0_28] : memref<1x20x20x32xf32, #tpu.memory_space<vmem>>, vector<1x1x20x32xf32>
    tpu.vector_store %arg7[%c0_26, %c19, %c0_27, %c0_28], %7 {strides = array<i32>} : memref<1x20x20x32xf32, #tpu.memory_space<vmem>>, vector<1x1x20x32xf32>,
    %c0_29 = arith.constant 0 : index
    %c0_30 = arith.constant 0 : index
    %c10_31 = arith.constant 10 : index
    %c0_32 = arith.constant 0 : index
    %15 = vector.load %arg7[%c0_29, %c0_30, %c10_31, %c0_32] : memref<1x20x20x32xf32, #tpu.memory_space<vmem>>, vector<1x20x1x32xf32>
    tpu.vector_store %arg7[%c0_29, %c0_30, %c10_31, %c0_32], %8 {strides = array<i32>} : memref<1x20x20x32xf32, #tpu.memory_space<vmem>>, vector<1x20x1x32xf32>,
    %c0_33 = arith.constant 0 : index
    %c0_34 = arith.constant 0 : index
    %c19_35 = arith.constant 19 : index
    %c0_36 = arith.constant 0 : index
    %16 = vector.load %arg7[%c0_33, %c0_34, %c19_35, %c0_36] : memref<1x20x20x32xf32, #tpu.memory_space<vmem>>, vector<1x20x1x32xf32>
    tpu.vector_store %arg7[%c0_33, %c0_34, %c19_35, %c0_36], %8 {strides = array<i32>} : memref<1x20x20x32xf32, #tpu.memory_space<vmem>>, vector<1x20x1x32xf32>,
    %17 = vector.extract_strided_slice %6 {offsets = [0, 0, 0, 0], sizes = [1, 8, 8, 32], strides = [1, 1, 1, 1]} : vector<1x16x16x32xf32> to vector<1x8x8x32xf32>
    %c0_37 = arith.constant 0 : index
    %c1 = arith.constant 1 : index
    %c1_38 = arith.constant 1 : index
    %c0_39 = arith.constant 0 : index
    %18 = vector.load %arg7[%c0_37, %c1, %c1_38, %c0_39] : memref<1x20x20x32xf32, #tpu.memory_space<vmem>>, vector<1x8x8x32xf32>
    tpu.vector_store %arg7[%c0_37, %c1, %c1_38, %c0_39], %17 {strides = array<i32>} : memref<1x20x20x32xf32, #tpu.memory_space<vmem>>, vector<1x8x8x32xf32>,
    %19 = vector.extract_strided_slice %6 {offsets = [0, 0, 8, 0], sizes = [1, 8, 8, 32], strides = [1, 1, 1, 1]} : vector<1x16x16x32xf32> to vector<1x8x8x32xf32>
    %c0_40 = arith.constant 0 : index
    %c1_41 = arith.constant 1 : index
    %c11 = arith.constant 11 : index
    %c0_42 = arith.constant 0 : index
    %20 = vector.load %arg7[%c0_40, %c1_41, %c11, %c0_42] : memref<1x20x20x32xf32, #tpu.memory_space<vmem>>, vector<1x8x8x32xf32>
    tpu.vector_store %arg7[%c0_40, %c1_41, %c11, %c0_42], %19 {strides = array<i32>} : memref<1x20x20x32xf32, #tpu.memory_space<vmem>>, vector<1x8x8x32xf32>,
    %21 = vector.extract_strided_slice %6 {offsets = [0, 8, 0, 0], sizes = [1, 8, 8, 32], strides = [1, 1, 1, 1]} : vector<1x16x16x32xf32> to vector<1x8x8x32xf32>
    %c0_43 = arith.constant 0 : index
    %c11_44 = arith.constant 11 : index
    %c1_45 = arith.constant 1 : index
    %c0_46 = arith.constant 0 : index
    %22 = vector.load %arg7[%c0_43, %c11_44, %c1_45, %c0_46] : memref<1x20x20x32xf32, #tpu.memory_space<vmem>>, vector<1x8x8x32xf32>
    tpu.vector_store %arg7[%c0_43, %c11_44, %c1_45, %c0_46], %21 {strides = array<i32>} : memref<1x20x20x32xf32, #tpu.memory_space<vmem>>, vector<1x8x8x32xf32>,
    %23 = vector.extract_strided_slice %6 {offsets = [0, 8, 8, 0], sizes = [1, 8, 8, 32], strides = [1, 1, 1, 1]} : vector<1x16x16x32xf32> to vector<1x8x8x32xf32>
    %c0_47 = arith.constant 0 : index
    %c11_48 = arith.constant 11 : index
    %c11_49 = arith.constant 11 : index
    %c0_50 = arith.constant 0 : index
    %24 = vector.load %arg7[%c0_47, %c11_48, %c11_49, %c0_50] : memref<1x20x20x32xf32, #tpu.memory_space<vmem>>, vector<1x8x8x32xf32>
    tpu.vector_store %arg7[%c0_47, %c11_48, %c11_49, %c0_50], %23 {strides = array<i32>} : memref<1x20x20x32xf32, #tpu.memory_space<vmem>>, vector<1x8x8x32xf32>,
    %c0_51 = arith.constant 0 : index
    %c0_52 = arith.constant 0 : index
    %c10_53 = arith.constant 10 : index
    %c0_54 = arith.constant 0 : index
    %25 = vector.load %arg7[%c0_51, %c0_52, %c10_53, %c0_54] : memref<1x20x20x32xf32, #tpu.memory_space<vmem>>, vector<1x20x8x32xf32>
    %c0_55 = arith.constant 0 : index
    %c0_56 = arith.constant 0 : index
    %c1_57 = arith.constant 1 : index
    %c0_58 = arith.constant 0 : index
    %26 = vector.load %arg7[%c0_55, %c0_56, %c1_57, %c0_58] : memref<1x20x20x32xf32, #tpu.memory_space<vmem>>, vector<1x20x8x32xf32>
    %c0_59 = arith.constant 0 : index
    %c0_60 = arith.constant 0 : index
    %c11_61 = arith.constant 11 : index
    %c0_62 = arith.constant 0 : index
    %27 = vector.load %arg7[%c0_59, %c0_60, %c11_61, %c0_62] : memref<1x20x20x32xf32, #tpu.memory_space<vmem>>, vector<1x20x8x32xf32>
    %28 = vector.extract_strided_slice %25 {offsets = [0, 10, 0, 0], sizes = [1, 8, 8, 32], strides = [1, 1, 1, 1]} : vector<1x20x8x32xf32> to vector<1x8x8x32xf32>
    %29 = vector.extract_strided_slice %26 {offsets = [0, 10, 0, 0], sizes = [1, 8, 8, 32], strides = [1, 1, 1, 1]} : vector<1x20x8x32xf32> to vector<1x8x8x32xf32>
    %30 = vector.extract_strided_slice %27 {offsets = [0, 10, 0, 0], sizes = [1, 8, 8, 32], strides = [1, 1, 1, 1]} : vector<1x20x8x32xf32> to vector<1x8x8x32xf32>
    %31 = vector.extract_strided_slice %25 {offsets = [0, 1, 0, 0], sizes = [1, 8, 8, 32], strides = [1, 1, 1, 1]} : vector<1x20x8x32xf32> to vector<1x8x8x32xf32>
    %32 = vector.extract_strided_slice %26 {offsets = [0, 1, 0, 0], sizes = [1, 8, 8, 32], strides = [1, 1, 1, 1]} : vector<1x20x8x32xf32> to vector<1x8x8x32xf32>
    %33 = vector.extract_strided_slice %27 {offsets = [0, 1, 0, 0], sizes = [1, 8, 8, 32], strides = [1, 1, 1, 1]} : vector<1x20x8x32xf32> to vector<1x8x8x32xf32>
    %34 = vector.extract_strided_slice %25 {offsets = [0, 11, 0, 0], sizes = [1, 8, 8, 32], strides = [1, 1, 1, 1]} : vector<1x20x8x32xf32> to vector<1x8x8x32xf32>
    %35 = vector.extract_strided_slice %26 {offsets = [0, 11, 0, 0], sizes = [1, 8, 8, 32], strides = [1, 1, 1, 1]} : vector<1x20x8x32xf32> to vector<1x8x8x32xf32>
    %36 = vector.extract_strided_slice %27 {offsets = [0, 11, 0, 0], sizes = [1, 8, 8, 32], strides = [1, 1, 1, 1]} : vector<1x20x8x32xf32> to vector<1x8x8x32xf32>
    %37 = tpu.concatenate %28, %29, %30, %31, %32, %33, %34, %35, %36 in 3 : vector<1x8x8x32xf32>, vector<1x8x8x32xf32>, vector<1x8x8x32xf32>, vector<1x8x8x32xf32>, vector<1x8x8x32xf32>, vector<1x8x8x32xf32>, vector<1x8x8x32xf32>, vector<1x8x8x32xf32>, vector<1x8x8x32xf32> -> vector<1x8x8x288xf32>
    %38 = vector.shape_cast %37 : vector<1x8x8x288xf32> to vector<64x288xf32>
    %39 = arith.truncf %38 : vector<64x288xf32> to vector<64x288xbf16>
    %c0_63 = arith.constant 0 : index
    %c0_64 = arith.constant 0 : index
    %40 = vector.load %arg3[%c0_63, %c0_64] : memref<288x32xbf16, #tpu.memory_space<vmem>>, vector<288x32xbf16>
    %cst_65 = arith.constant dense<0.000000e+00> : vector<64x32xf32>
    %41 = tpu.matmul %39, %40, %cst_65 {dimension_numbers = #tpu.dot_dimension_numbers<[1], [0], [0], [1], [0, 0, 1, 1], [], []>} : vector<64x288xbf16>, vector<288x32xbf16>, vector<64x32xf32> -> vector<64x32xf32>
    %cst_66 = arith.constant 0.000000e+00 : f32
    %42 = vector.broadcast %cst_66 : f32 to vector<64x32xf32>
    %43 = arith.maximumf %41, %42 : vector<64x32xf32>
    %44 = arith.truncf %43 : vector<64x32xf32> to vector<64x32xbf16>
    %c0_67 = arith.constant 0 : index
    %c0_68 = arith.constant 0 : index
    %45 = vector.load %arg4[%c0_67, %c0_68] : memref<32x64xbf16, #tpu.memory_space<vmem>>, vector<32x64xbf16>
    %cst_69 = arith.constant dense<0.000000e+00> : vector<64x64xf32>
    %46 = tpu.matmul %44, %45, %cst_69 {dimension_numbers = #tpu.dot_dimension_numbers<[1], [0], [0], [1], [0, 0, 1, 1], [], []>} : vector<64x32xbf16>, vector<32x64xbf16>, vector<64x64xf32> -> vector<64x64xf32>
    %c0_70 = arith.constant 0 : index
    %c0_71 = arith.constant 0 : index
    %47 = vector.load %arg5[%c0_70, %c0_71] : memref<1x64xf32, #tpu.memory_space<vmem>>, vector<1x64xf32>
    %48 = vector.broadcast %47 : vector<1x64xf32> to vector<64x64xf32>
    %49 = arith.addf %46, %48 : vector<64x64xf32>
    %50 = vector.shape_cast %49 : vector<64x64xf32> to vector<1x64x64xf32>
    %c0_72 = arith.constant 0 : index
    %c0_73 = arith.constant 0 : index
    %c0_74 = arith.constant 0 : index
    %51 = vector.load %arg6[%c0_72, %c0_73, %c0_74] : memref<1x64x64xf32, #tpu.memory_space<vmem>>, vector<1x64x64xf32>
    tpu.vector_store %arg6[%c0_72, %c0_73, %c0_74], %50 {strides = array<i32>} : memref<1x64x64xf32, #tpu.memory_space<vmem>>, vector<1x64x64xf32>,
    return
  }
  func.func @transform_0(%arg0: i32) -> (i32, i32, i32, i32) {
    %c0_i32 = arith.constant 0 : i32
    %c0_i32_0 = arith.constant 0 : i32
    %c0_i32_1 = arith.constant 0 : i32
    %c0_i32_2 = arith.constant 0 : i32
    return %arg0, %c0_i32, %c0_i32_0, %c0_i32_1 : i32, i32, i32, i32
  }
  func.func @transform_1(%arg0: i32) -> (i32, i32) {
    %c0_i32 = arith.constant 0 : i32
    %c0_i32_0 = arith.constant 0 : i32
    %c0_i32_1 = arith.constant 0 : i32
    return %c0_i32, %c0_i32_0 : i32, i32
  }
  func.func @transform_2(%arg0: i32) -> (i32, i32) {
    %c0_i32 = arith.constant 0 : i32
    %c0_i32_0 = arith.constant 0 : i32
    %c0_i32_1 = arith.constant 0 : i32
    return %c0_i32, %c0_i32_0 : i32, i32
  }
  func.func @transform_3(%arg0: i32) -> (i32, i32) {
    %c0_i32 = arith.constant 0 : i32
    %c0_i32_0 = arith.constant 0 : i32
    %c0_i32_1 = arith.constant 0 : i32
    return %c0_i32, %c0_i32_0 : i32, i32
  }
  func.func @transform_4(%arg0: i32) -> (i32, i32) {
    %c0_i32 = arith.constant 0 : i32
    %c0_i32_0 = arith.constant 0 : i32
    %c0_i32_1 = arith.constant 0 : i32
    return %c0_i32, %c0_i32_0 : i32, i32
  }
  func.func @transform_5(%arg0: i32) -> (i32, i32, i32) {
    %c0_i32 = arith.constant 0 : i32
    %c0_i32_0 = arith.constant 0 : i32
    %c0_i32_1 = arith.constant 0 : i32
    return %arg0, %c0_i32, %c0_i32_0 : i32, i32, i32
  }
}

</mosaic_0001>

<llo_original>
// kernel: tpu_custom_call.1
$region0: #{tpu_custom_call.1}
  #allocation0 [shape = 'u32[]', space=smem, size = 0x4, offset = 0x4, fixed_abs, tag = 'smem constant byte address 0x4 - core index']
  #allocation1 [shape = 'u32[144,128]{1,0:T(1,128)}', space=vmem, size = 0x12000, scoped, tag = 'internal scratch']
  #allocation2 [shape = 'f32[1,20,20,32]{3,2,1,0:T(8,128)}', space=vmem, size = 0x3c000, scoped, tag = 'scratch operand']
  %s0 = inlined_call_operand.hbm [shape: bf16[2,16,16,32], index: 0, kind: input, shape index: {}]
  %s1 = inlined_call_operand.vmem [shape: bf16[32,32], index: 1, kind: input, shape index: {}]
  %s2 = inlined_call_operand.vmem [shape: bf16[288,32], index: 2, kind: input, shape index: {}]
  %s3 = inlined_call_operand.vmem [shape: bf16[32,64], index: 3, kind: input, shape index: {}]
  %s4 = inlined_call_operand.vmem [shape: f32[1,64], index: 4, kind: input, shape index: {}]
  %s5 = inlined_call_operand.hbm [shape: f32[2,64,64], index: 5, kind: output, shape index: {}]
  %s6 = sld [smem:[#allocation0]]
  $region57: #{tpu_custom_call.1} parent=0
    _
  %s8 = ssub.s32 1, %s6
  %s9 = scalar_select 0, %s8, %s6
  $region1: #{tpu_custom_call.1} parent=0
    #allocation3 [shape = 'u8[131072]{0}', space=vmem, size = 0x20000, scoped, tag = 'input window, operand 0']
    #allocation4 [shape = 's32[2]{0}', space=sflag, size = 0x8, scoped, tag = 'scoped memory for tpu_custom_call.1']
    #allocation5 [shape = 's32[2]{0}', space=sflag, size = 0x8, scoped, tag = 'scoped memory for tpu_custom_call.1']
    #allocation6 [shape = 'u8[65536]{0}', space=vmem, size = 0x10000, scoped, tag = 'output window, operand 0']
    %10 = vsyncpa [#allocation4], 0
    %s11 = scalar_lea.sflag [#allocation4], 1
    %12 = vsyncpa %s11, 0
    %13 = vsyncpa [#allocation5], 0
    %s14 = scalar_lea.sflag [#allocation5], 1
    %15 = vsyncpa %s14, 0
    loop: start=0, step=1, limit=4
    $region2: #{tpu_custom_call.1} parent=1 // loop_pre_header
      _
    $region3: #{tpu_custom_call.1} parent=1 // loop_header
      %s17 = sphi 0, %s21
      %p18 = scmp.ge.s32.totalorder %s17, 4
      %s27 = sphi 0, %s29
      %s30 = sphi 0, %s27
      %s31 = sphi 0, %s30
      %s47 = sphi 0, %s31
      %s51 = sphi 0, %s51
      %s53 = sphi 0, %s51
      %s54 = sphi 0, %s53
      %s68 = sphi 0, %s54
      %s72 = sphi 0, %s72
      %s74 = sphi 0, %s72
      %s75 = sphi 0, %s74
      %s89 = sphi 0, %s75
      %s93 = sphi 0, %s93
      %s95 = sphi 0, %s93
      %s96 = sphi 0, %s95
      %s110 = sphi 0, %s96
      %s114 = sphi 0, %s114
      %s116 = sphi 0, %s114
      %s117 = sphi 0, %s116
      %s131 = sphi 0, %s117
      %s137 = sphi 0, %s139
      %s140 = sphi 0, %s137
      %s141 = sphi 0, %s140
      %s157 = sphi 0, %s141
    $region4: #{tpu_custom_call.1} parent=1 // loop_header_branch
      %20 = sbr.rel (%p18) target = $region8
    $region5: #{tpu_custom_call.1} parent=1 // loop_body
      %s22 = ssub.s32 %s17, 1
      %s23 = ssub.s32 %s17, 2
      %s24 = sadd.s32 %s17, 1
      %s25 = ssub.s32 %s17, %s24
      %p26 = scmp.eq.s32.totalorder %s25, 0
      %s28 = sadd.s32 %s27, 1
      %s29 = scalar_select %p26, %s27, %s28
      %p32 = pneg %p26
      %p33 = scmp.eq.s32.totalorder %s17, 1
      %p34 = por %p32, %p33
      %p35 = scmp.ne.s32.totalorder %s27, %s30
      %p36 = scmp.eq.s32.totalorder %s17, 0
      %p37 = por %p35, %p36
      %p38 = scmp.ne.s32.totalorder %s27, %s30
      %p39 = scmp.eq.s32.totalorder %s22, 1
      %p40 = por %p38, %p39
      %p41 = scmp.ne.s32.totalorder %s30, %s31
      %p42 = scmp.eq.s32.totalorder %s22, 0
      %p43 = por %p41, %p42
      %p44 = scmp.ne.s32.totalorder %s30, %s31
      %p45 = scmp.eq.s32.totalorder %s23, 1
      %p46 = por %p44, %p45
      %p48 = scmp.ne.s32.totalorder %s31, %s47
      %p49 = scmp.eq.s32.totalorder %s23, 0
      %p50 = por %p48, %p49
      %s52 = sadd.s32 %s51, 1
      %p55 = scmp.eq.s32.totalorder %s17, 1
      %p56 = scmp.ne.s32.totalorder %s51, %s53
      %p57 = scmp.eq.s32.totalorder %s17, 0
      %p58 = por %p56, %p57
      %p59 = scmp.ne.s32.totalorder %s51, %s53
      %p60 = scmp.eq.s32.totalorder %s22, 1
      %p61 = por %p59, %p60
      %p62 = scmp.ne.s32.totalorder %s53, %s54
      %p63 = scmp.eq.s32.totalorder %s22, 0
      %p64 = por %p62, %p63
      %p65 = scmp.ne.s32.totalorder %s53, %s54
      %p66 = scmp.eq.s32.totalorder %s23, 1
      %p67 = por %p65, %p66
      %p69 = scmp.ne.s32.totalorder %s54, %s68
      %p70 = scmp.eq.s32.totalorder %s23, 0
      %p71 = por %p69, %p70
      %s73 = sadd.s32 %s72, 1
      %p76 = scmp.eq.s32.totalorder %s17, 1
      %p77 = scmp.ne.s32.totalorder %s72, %s74
      %p78 = scmp.eq.s32.totalorder %s17, 0
      %p79 = por %p77, %p78
      %p80 = scmp.ne.s32.totalorder %s72, %s74
      %p81 = scmp.eq.s32.totalorder %s22, 1
      %p82 = por %p80, %p81
      %p83 = scmp.ne.s32.totalorder %s74, %s75
      %p84 = scmp.eq.s32.totalorder %s22, 0
      %p85 = por %p83, %p84
      %p86 = scmp.ne.s32.totalorder %s74, %s75
      %p87 = scmp.eq.s32.totalorder %s23, 1
      %p88 = por %p86, %p87
      %p90 = scmp.ne.s32.totalorder %s75, %s89
      %p91 = scmp.eq.s32.totalorder %s23, 0
      %p92 = por %p90, %p91
      %s94 = sadd.s32 %s93, 1
      %p97 = scmp.eq.s32.totalorder %s17, 1
      %p98 = scmp.ne.s32.totalorder %s93, %s95
      %p99 = scmp.eq.s32.totalorder %s17, 0
      %p100 = por %p98, %p99
      %p101 = scmp.ne.s32.totalorder %s93, %s95
      %p102 = scmp.eq.s32.totalorder %s22, 1
      %p103 = por %p101, %p102
      %p104 = scmp.ne.s32.totalorder %s95, %s96
      %p105 = scmp.eq.s32.totalorder %s22, 0
      %p106 = por %p104, %p105
      %p107 = scmp.ne.s32.totalorder %s95, %s96
      %p108 = scmp.eq.s32.totalorder %s23, 1
      %p109 = por %p107, %p108
      %p111 = scmp.ne.s32.totalorder %s96, %s110
      %p112 = scmp.eq.s32.totalorder %s23, 0
      %p113 = por %p111, %p112
      %s115 = sadd.s32 %s114, 1
      %p118 = scmp.eq.s32.totalorder %s17, 1
      %p119 = scmp.ne.s32.totalorder %s114, %s116
      %p120 = scmp.eq.s32.totalorder %s17, 0
      %p121 = por %p119, %p120
      %p122 = scmp.ne.s32.totalorder %s114, %s116
      %p123 = scmp.eq.s32.totalorder %s22, 1
      %p124 = por %p122, %p123
      %p125 = scmp.ne.s32.totalorder %s116, %s117
      %p126 = scmp.eq.s32.totalorder %s22, 0
      %p127 = por %p125, %p126
      %p128 = scmp.ne.s32.totalorder %s116, %s117
      %p129 = scmp.eq.s32.totalorder %s23, 1
      %p130 = por %p128, %p129
      %p132 = scmp.ne.s32.totalorder %s117, %s131
      %p133 = scmp.eq.s32.totalorder %s23, 0
      %p134 = por %p132, %p133
      %s135 = ssub.s32 %s17, %s24
      %p136 = scmp.eq.s32.totalorder %s135, 0
      %s138 = sadd.s32 %s137, 1
      %s139 = scalar_select %p136, %s137, %s138
      %p142 = pneg %p136
      %p143 = scmp.eq.s32.totalorder %s17, 1
      %p144 = por %p142, %p143
      %p145 = scmp.ne.s32.totalorder %s137, %s140
      %p146 = scmp.eq.s32.totalorder %s17, 0
      %p147 = por %p145, %p146
      %p148 = scmp.ne.s32.totalorder %s137, %s140
      %p149 = scmp.eq.s32.totalorder %s22, 1
      %p150 = por %p148, %p149
      %p151 = scmp.ne.s32.totalorder %s140, %s141
      %p152 = scmp.eq.s32.totalorder %s22, 0
      %p153 = por %p151, %p152
      %p154 = scmp.ne.s32.totalorder %s140, %s141
      %p155 = scmp.eq.s32.totalorder %s23, 1
      %p156 = por %p154, %p155
      %p158 = scmp.ne.s32.totalorder %s141, %s157
      %p159 = scmp.eq.s32.totalorder %s23, 0
      %p160 = por %p158, %p159
      %p161 = scmp.le.s32.totalorder 1, %s17
      %p162 = scmp.lt.s32.totalorder %s17, 3
      %p163 = pnand %p161, %p162
      %p164 = pneg %p163
      // Predicated region
      $region9: #{tpu_custom_call.1} parent=5 // pred_check
        _
      $region10: #{tpu_custom_call.1} parent=5 // pred_check_branch
        %166 = sbr.rel (%p163) target = $region12
      $region11: #{tpu_custom_call.1} parent=5 // pred_region
        %s167 = ssub.s32 %s17, 1
        // Predicated region
        $region13: #{tpu_custom_call.1} parent=11 // pred_check
          %p168 = pneg %p64
        $region14: #{tpu_custom_call.1} parent=11 // pred_check_branch
          %170 = sbr.rel (%p168) target = $region16
        $region15: #{tpu_custom_call.1} parent=11 // pred_region
          _
        $region16: #{tpu_custom_call.1} parent=11 // pred_fallthru
          _
        // Predicated region
        $region17: #{tpu_custom_call.1} parent=11 // pred_check
          %p171 = pneg %p85
        $region18: #{tpu_custom_call.1} parent=11 // pred_check_branch
          %173 = sbr.rel (%p171) target = $region20
        $region19: #{tpu_custom_call.1} parent=11 // pred_region
          _
        $region20: #{tpu_custom_call.1} parent=11 // pred_fallthru
          _
        // Predicated region
        $region21: #{tpu_custom_call.1} parent=11 // pred_check
          %p174 = pneg %p106
        $region22: #{tpu_custom_call.1} parent=11 // pred_check_branch
          %176 = sbr.rel (%p174) target = $region24
        $region23: #{tpu_custom_call.1} parent=11 // pred_region
          _
        $region24: #{tpu_custom_call.1} parent=11 // pred_fallthru
          _
        // Predicated region
        $region25: #{tpu_custom_call.1} parent=11 // pred_check
          %p177 = pneg %p127
        $region26: #{tpu_custom_call.1} parent=11 // pred_check_branch
          %179 = sbr.rel (%p177) target = $region28
        $region27: #{tpu_custom_call.1} parent=11 // pred_region
          _
        $region28: #{tpu_custom_call.1} parent=11 // pred_fallthru
          _
      $region12: #{tpu_custom_call.1} parent=5 // pred_fallthru
        _
      %p180 = scmp.lt.s32.totalorder %s17, 2
      // Predicated region
      $region29: #{tpu_custom_call.1} parent=5 // pred_check
        %p181 = pneg %p180
      $region30: #{tpu_custom_call.1} parent=5 // pred_check_branch
        %183 = sbr.rel (%p181) target = $region32
      $region31: #{tpu_custom_call.1} parent=5 // pred_region
        // Predicated region
        $region33: #{tpu_custom_call.1} parent=31 // pred_check
          %p184 = pneg %p37
        $region34: #{tpu_custom_call.1} parent=31 // pred_check_branch
          %186 = sbr.rel (%p184) target = $region36
        $region35: #{tpu_custom_call.1} parent=31 // pred_region
          %s187 = sand.u32 %s27, 1
          %s188 = scalar_lea.sflag [#allocation4], %s187
          %s189 = sand.u32 %s27, 1
          %s190 = smul.addr %s189, 128
          %s191 = scalar_lea.vmem [#allocation3], %s190
          %s193 = ssub.s32 2048, 2048
          %194 = vsyncadd %s188, %s193
          %s195 = smul.addr %s17, 32
          %s196 = smul.addr %s195, 64
          %s197 = scalar_lea.hbm %s0, %s196
          %s198 = sshll.u32 %s191, 4
          %s199 = int_to_ptr.vmem [resolvable:$true] %s198
          %204 = dma.hbm_to_vmem [thread:$0]  %s197, 2048, %s199, %s188, 64, 64, 4
        $region36: #{tpu_custom_call.1} parent=31 // pred_fallthru
          _
      $region32: #{tpu_custom_call.1} parent=5 // pred_fallthru
        _
      %p205 = scmp.le.s32.totalorder 1, %s17
      %p206 = scmp.lt.s32.totalorder %s17, 3
      %p207 = pnand %p205, %p206
      %p208 = pneg %p207
      // Predicated region
      $region37: #{tpu_custom_call.1} parent=5 // pred_check
        _
      $region38: #{tpu_custom_call.1} parent=5 // pred_check_branch
        %210 = sbr.rel (%p207) target = $region40
      $region39: #{tpu_custom_call.1} parent=5 // pred_region
        %s211 = ssub.s32 %s17, 1
        %s212 = sand.u32 %s30, 1
        %s213 = scalar_lea.sflag [#allocation4], %s212
        %s214 = sand.u32 %s30, 1
        %s215 = smul.addr %s214, 128
        %s216 = scalar_lea.vmem [#allocation3], %s215
        // Predicated region
        $region41: #{tpu_custom_call.1} parent=39 // pred_check
          %p217 = pneg %p43
        $region42: #{tpu_custom_call.1} parent=39 // pred_check_branch
          %219 = sbr.rel (%p217) target = $region44
        $region43: #{tpu_custom_call.1} parent=39 // pred_region
          %220 = dma.done %s213, 2048
        $region44: #{tpu_custom_call.1} parent=39 // pred_fallthru
          _
        %s221 = sand.u32 %s30, 1
        %s222 = scalar_lea.sflag [#allocation4], %s221
        %s223 = sand.u32 %s30, 1
        %s224 = smul.addr %s223, 128
        %s225 = scalar_lea.vmem [#allocation3], %s224
        %p226 = pneg %p43
        %p227 = pneg %p40
        %p228 = pneg %p64
        %p229 = pneg %p61
        %p230 = pneg %p85
        %p231 = pneg %p82
        %p232 = pneg %p106
        %p233 = pneg %p103
        %p234 = pneg %p127
        %p235 = pneg %p124
        %p236 = pneg %p153
        %p237 = pneg %p150
        %s238 = sand.u32 %s140, 1
        %s239 = scalar_lea.sflag [#allocation5], %s238
        %s240 = sand.u32 %s140, 1
        %s241 = smul.addr %s240, 64
        %s242 = scalar_lea.vmem [#allocation6], %s241
        %v244 = vld [vmem:[%s216] sm:$0xf]
        %v245 = vld [vmem:[%s216 + $0x4] sm:$0xf]
        %v246 = vld [vmem:[%s216 + $0x8] sm:$0xf]
        %v247 = vld [vmem:[%s216 + $0xc] sm:$0xf]
        %v248 = vld [vmem:[%s216 + $0x10] sm:$0xf]
        %v249 = vld [vmem:[%s216 + $0x14] sm:$0xf]
        %v250 = vld [vmem:[%s216 + $0x18] sm:$0xf]
        %v251 = vld [vmem:[%s216 + $0x1c] sm:$0xf]
        %v252 = vld [vmem:[%s216 + $0x20] sm:$0xf]
        %v253 = vld [vmem:[%s216 + $0x24] sm:$0xf]
        %v254 = vld [vmem:[%s216 + $0x28] sm:$0xf]
        %v255 = vld [vmem:[%s216 + $0x2c] sm:$0xf]
        %v256 = vld [vmem:[%s216 + $0x30] sm:$0xf]
        %v257 = vld [vmem:[%s216 + $0x34] sm:$0xf]
        %v258 = vld [vmem:[%s216 + $0x38] sm:$0xf]
        %v259 = vld [vmem:[%s216 + $0x3c] sm:$0xf]
        %v260 = vld [vmem:[%s216 + $0x40] sm:$0xf]
        %v261 = vld [vmem:[%s216 + $0x44] sm:$0xf]
        %v262 = vld [vmem:[%s216 + $0x48] sm:$0xf]
        %v263 = vld [vmem:[%s216 + $0x4c] sm:$0xf]
        %v264 = vld [vmem:[%s216 + $0x50] sm:$0xf]
        %v265 = vld [vmem:[%s216 + $0x54] sm:$0xf]
        %v266 = vld [vmem:[%s216 + $0x58] sm:$0xf]
        %v267 = vld [vmem:[%s216 + $0x5c] sm:$0xf]
        %v268 = vld [vmem:[%s216 + $0x60] sm:$0xf]
        %v269 = vld [vmem:[%s216 + $0x64] sm:$0xf]
        %v270 = vld [vmem:[%s216 + $0x68] sm:$0xf]
        %v271 = vld [vmem:[%s216 + $0x6c] sm:$0xf]
        %v272 = vld [vmem:[%s216 + $0x70] sm:$0xf]
        %v273 = vld [vmem:[%s216 + $0x74] sm:$0xf]
        %v274 = vld [vmem:[%s216 + $0x78] sm:$0xf]
        %v275 = vld [vmem:[%s216 + $0x7c] sm:$0xf]
        %v276 = vld [vmem:[%s1] sm:$0xf]
        %v277 = vld [vmem:[%s1 + $0x4] sm:$0xf]
        %v278 = vld [vmem:[%s1 + $0x8] sm:$0xf]
        %v279 = vld [vmem:[%s1 + $0xc] sm:$0xf]
        %v312 = vunpack.c.l.b16 %v244
        %v313 = vunpack.c.l.b16 %v245
        %v314 = vunpack.c.l.b16 %v246
        %v315 = vunpack.c.l.b16 %v247
        %v316 = vunpack.c.l.b16 %v248
        %v317 = vunpack.c.l.b16 %v249
        %v318 = vunpack.c.l.b16 %v250
        %v319 = vunpack.c.l.b16 %v251
        %v320 = vunpack.c.l.b16 %v252
        %v321 = vunpack.c.l.b16 %v253
        %v322 = vunpack.c.l.b16 %v254
        %v323 = vunpack.c.l.b16 %v255
        %v324 = vunpack.c.l.b16 %v256
        %v325 = vunpack.c.l.b16 %v257
        %v326 = vunpack.c.l.b16 %v258
        %v327 = vunpack.c.l.b16 %v259
        %v328 = vunpack.c.l.b16 %v260
        %v329 = vunpack.c.l.b16 %v261
        %v330 = vunpack.c.l.b16 %v262
        %v331 = vunpack.c.l.b16 %v263
        %v332 = vunpack.c.l.b16 %v264
        %v333 = vunpack.c.l.b16 %v265
        %v334 = vunpack.c.l.b16 %v266
        %v335 = vunpack.c.l.b16 %v267
        %v336 = vunpack.c.l.b16 %v268
        %v337 = vunpack.c.l.b16 %v269
        %v338 = vunpack.c.l.b16 %v270
        %v339 = vunpack.c.l.b16 %v271
        %v340 = vunpack.c.l.b16 %v272
        %v341 = vunpack.c.l.b16 %v273
        %v342 = vunpack.c.l.b16 %v274
        %v343 = vunpack.c.l.b16 %v275
        %v344 = vpack.c.b16 %v313, %v312
        %v345 = vpack.c.b16 %v315, %v314
        %v346 = vpack.c.b16 %v317, %v316
        %v347 = vpack.c.b16 %v319, %v318
        %v348 = vpack.c.b16 %v321, %v320
        %v349 = vpack.c.b16 %v323, %v322
        %v350 = vpack.c.b16 %v325, %v324
        %v351 = vpack.c.b16 %v327, %v326
        %v352 = vpack.c.b16 %v329, %v328
        %v353 = vpack.c.b16 %v331, %v330
        %v354 = vpack.c.b16 %v333, %v332
        %v355 = vpack.c.b16 %v335, %v334
        %v356 = vpack.c.b16 %v337, %v336
        %v357 = vpack.c.b16 %v339, %v338
        %v358 = vpack.c.b16 %v341, %v340
        %v359 = vpack.c.b16 %v343, %v342
        %v364 = vunpack.c.l.b16 %v276
        %v365 = vunpack.c.l.b16 %v277
        %v366 = vunpack.c.l.b16 %v278
        %v367 = vunpack.c.l.b16 %v279
        %v368 = vpack.c.b16 %v365, %v364
        %v369 = vpack.c.b16 %v367, %v366
        %vm372 = vcmask 261120
        %v374 = vsel %vm372, %v344, 0
        %v377 = vsel %vm372, %v345, 0
        %v380 = vsel %vm372, %v346, 0
        %v383 = vsel %vm372, %v347, 0
        %v386 = vsel %vm372, %v348, 0
        %v389 = vsel %vm372, %v349, 0
        %v392 = vsel %vm372, %v350, 0
        %v395 = vsel %vm372, %v351, 0
        %v398 = vsel %vm372, %v352, 0
        %v401 = vsel %vm372, %v353, 0
        %v404 = vsel %vm372, %v354, 0
        %v407 = vsel %vm372, %v355, 0
        %v410 = vsel %vm372, %v356, 0
        %v413 = vsel %vm372, %v357, 0
        %v416 = vsel %vm372, %v358, 0
        %v419 = vsel %vm372, %v359, 0
        %421 = vmatprep.subr.bf16.mxu0 0
        %422 = vmatpush1.bf16.msra.mxu0 %v368
        %423 = vmatprep.subr.bf16.mxu0 0
        %424 = vmatpush1.bf16.msra.mxu0 %v369
        %425 = vmatprep.subr.bf16.mxu0 0
        %426 = vmatpush1.bf16.msra.mxu0 0
        %427 = vmatprep.subr.bf16.mxu0 0
        %428 = vmatpush1.bf16.msra.mxu0 0
        %429 = vmatprep.subr.bf16.mxu0 0
        %430 = vmatpush1.bf16.msra.mxu0 0
        %431 = vmatprep.subr.bf16.mxu0 0
        %432 = vmatpush1.bf16.msra.mxu0 0
        %433 = vmatprep.subr.bf16.mxu0 0
        %434 = vmatpush1.bf16.msra.mxu0 0
        %435 = vmatprep.subr.bf16.mxu0 0
        %436 = vmatpush1.bf16.msra.mxu0 0
        %437 = vmatprep.subr.bf16.mxu0 0
        %438 = vmatpush1.bf16.msra.mxu0 0
        %439 = vmatprep.subr.bf16.mxu0 0
        %440 = vmatpush1.bf16.msra.mxu0 0
        %441 = vmatprep.subr.bf16.mxu0 0
        %442 = vmatpush1.bf16.msra.mxu0 0
        %443 = vmatprep.subr.bf16.mxu0 0
        %444 = vmatpush1.bf16.msra.mxu0 0
        %445 = vmatprep.subr.bf16.mxu0 0
        %446 = vmatpush1.bf16.msra.mxu0 0
        %447 = vmatprep.subr.bf16.mxu0 0
        %448 = vmatpush1.bf16.msra.mxu0 0
        %449 = vmatprep.subr.bf16.mxu0 0
        %450 = vmatpush1.bf16.msra.mxu0 0
        %451 = vmatprep.subr.bf16.mxu0 0
        %452 = vmatpush1.bf16.msra.mxu0 0
        %453 = vmatprep.mubr.bf16.mxu0 0
        %454 = vmatmul.mubr.bf16.gmra.mrb[0].mxu0 %v374
        %v455 = vpop.f32.mrb[0].mxu0
        %v456 = vadd.f32 0.0, %v455
        %v457 = vpop.f32.mrb[0].mxu0
        %v458 = vpop.f32.mrb[0].mxu0
        %v459 = vadd.f32 0.0, %v458
        %v460 = vpop.f32.mrb[0].mxu0
        %461 = vmatprep.mubr.bf16.mxu0 0
        %462 = vmatmul.mubr.bf16.gmra.mrb[0].mxu0 %v377
        %v463 = vpop.f32.mrb[0].mxu0
        %v464 = vadd.f32 0.0, %v463
        %v465 = vpop.f32.mrb[0].mxu0
        %v466 = vpop.f32.mrb[0].mxu0
        %v467 = vadd.f32 0.0, %v466
        %v468 = vpop.f32.mrb[0].mxu0
        %469 = vmatprep.mubr.bf16.mxu0 0
        %470 = vmatmul.mubr.bf16.gmra.mrb[0].mxu0 %v380
        %v471 = vpop.f32.mrb[0].mxu0
        %v472 = vadd.f32 0.0, %v471
        %v473 = vpop.f32.mrb[0].mxu0
        %v474 = vpop.f32.mrb[0].mxu0
        %v475 = vadd.f32 0.0, %v474
        %v476 = vpop.f32.mrb[0].mxu0
        %477 = vmatprep.mubr.bf16.mxu0 0
        %478 = vmatmul.mubr.bf16.gmra.mrb[0].mxu0 %v383
        %v479 = vpop.f32.mrb[0].mxu0
        %v480 = vadd.f32 0.0, %v479
        %v481 = vpop.f32.mrb[0].mxu0
        %v482 = vpop.f32.mrb[0].mxu0
        %v483 = vadd.f32 0.0, %v482
        %v484 = vpop.f32.mrb[0].mxu0
        %485 = vmatprep.mubr.bf16.mxu0 0
        %486 = vmatmul.mubr.bf16.gmra.mrb[0].mxu0 %v386
        %v487 = vpop.f32.mrb[0].mxu0
        %v488 = vadd.f32 0.0, %v487
        %v489 = vpop.f32.mrb[0].mxu0
        %v490 = vpop.f32.mrb[0].mxu0
        %v491 = vadd.f32 0.0, %v490
        %v492 = vpop.f32.mrb[0].mxu0
        %493 = vmatprep.mubr.bf16.mxu0 0
        %494 = vmatmul.mubr.bf16.gmra.mrb[0].mxu0 %v389
        %v495 = vpop.f32.mrb[0].mxu0
        %v496 = vadd.f32 0.0, %v495
        %v497 = vpop.f32.mrb[0].mxu0
        %v498 = vpop.f32.mrb[0].mxu0
        %v499 = vadd.f32 0.0, %v498
        %v500 = vpop.f32.mrb[0].mxu0
        %501 = vmatprep.mubr.bf16.mxu0 0
        %502 = vmatmul.mubr.bf16.gmra.mrb[0].mxu0 %v392
        %v503 = vpop.f32.mrb[0].mxu0
        %v504 = vadd.f32 0.0, %v503
        %v505 = vpop.f32.mrb[0].mxu0
        %v506 = vpop.f32.mrb[0].mxu0
        %v507 = vadd.f32 0.0, %v506
        %v508 = vpop.f32.mrb[0].mxu0
        %509 = vmatprep.mubr.bf16.mxu0 0
        %510 = vmatmul.mubr.bf16.gmra.mrb[0].mxu0 %v395
        %v511 = vpop.f32.mrb[0].mxu0
        %v512 = vadd.f32 0.0, %v511
        %v513 = vpop.f32.mrb[0].mxu0
        %v514 = vpop.f32.mrb[0].mxu0
        %v515 = vadd.f32 0.0, %v514
        %v516 = vpop.f32.mrb[0].mxu0
        %517 = vmatprep.mubr.bf16.mxu0 0
        %518 = vmatmul.mubr.bf16.gmra.mrb[0].mxu0 %v398
        %v519 = vpop.f32.mrb[0].mxu0
        %v520 = vadd.f32 0.0, %v519
        %v521 = vpop.f32.mrb[0].mxu0
        %v522 = vpop.f32.mrb[0].mxu0
        %v523 = vadd.f32 0.0, %v522
        %v524 = vpop.f32.mrb[0].mxu0
        %525 = vmatprep.mubr.bf16.mxu0 0
        %526 = vmatmul.mubr.bf16.gmra.mrb[0].mxu0 %v401
        %v527 = vpop.f32.mrb[0].mxu0
        %v528 = vadd.f32 0.0, %v527
        %v529 = vpop.f32.mrb[0].mxu0
        %v530 = vpop.f32.mrb[0].mxu0
        %v531 = vadd.f32 0.0, %v530
        %v532 = vpop.f32.mrb[0].mxu0
        %533 = vmatprep.mubr.bf16.mxu0 0
        %534 = vmatmul.mubr.bf16.gmra.mrb[0].mxu0 %v404
        %v535 = vpop.f32.mrb[0].mxu0
        %v536 = vadd.f32 0.0, %v535
        %v537 = vpop.f32.mrb[0].mxu0
        %v538 = vpop.f32.mrb[0].mxu0
        %v539 = vadd.f32 0.0, %v538
        %v540 = vpop.f32.mrb[0].mxu0
        %541 = vmatprep.mubr.bf16.mxu0 0
        %542 = vmatmul.mubr.bf16.gmra.mrb[0].mxu0 %v407
        %v543 = vpop.f32.mrb[0].mxu0
        %v544 = vadd.f32 0.0, %v543
        %v545 = vpop.f32.mrb[0].mxu0
        %v546 = vpop.f32.mrb[0].mxu0
        %v547 = vadd.f32 0.0, %v546
        %v548 = vpop.f32.mrb[0].mxu0
        %549 = vmatprep.mubr.bf16.mxu0 0
        %550 = vmatmul.mubr.bf16.gmra.mrb[0].mxu0 %v410
        %v551 = vpop.f32.mrb[0].mxu0
        %v552 = vadd.f32 0.0, %v551
        %v553 = vpop.f32.mrb[0].mxu0
        %v554 = vpop.f32.mrb[0].mxu0
        %v555 = vadd.f32 0.0, %v554
        %v556 = vpop.f32.mrb[0].mxu0
        %557 = vmatprep.mubr.bf16.mxu0 0
        %558 = vmatmul.mubr.bf16.gmra.mrb[0].mxu0 %v413
        %v559 = vpop.f32.mrb[0].mxu0
        %v560 = vadd.f32 0.0, %v559
        %v561 = vpop.f32.mrb[0].mxu0
        %v562 = vpop.f32.mrb[0].mxu0
        %v563 = vadd.f32 0.0, %v562
        %v564 = vpop.f32.mrb[0].mxu0
        %565 = vmatprep.mubr.bf16.mxu0 0
        %566 = vmatmul.mubr.bf16.gmra.mrb[0].mxu0 %v416
        %v567 = vpop.f32.mrb[0].mxu0
        %v568 = vadd.f32 0.0, %v567
        %v569 = vpop.f32.mrb[0].mxu0
        %v570 = vpop.f32.mrb[0].mxu0
        %v571 = vadd.f32 0.0, %v570
        %v572 = vpop.f32.mrb[0].mxu0
        %573 = vmatprep.mubr.bf16.mxu0 0
        %574 = vmatmul.mubr.bf16.gmra.mrb[0].mxu0 %v419
        %v575 = vpop.f32.mrb[0].mxu0
        %v576 = vadd.f32 0.0, %v575
        %v577 = vpop.f32.mrb[0].mxu0
        %v578 = vpop.f32.mrb[0].mxu0
        %v579 = vadd.f32 0.0, %v578
        %v580 = vpop.f32.mrb[0].mxu0
        %581 = vdwg.mxu0
        %v582 = vmax.f32 %v456, 0.0
        %v583 = vmax.f32 %v459, 0.0
        %v584 = vmax.f32 %v464, 0.0
        %v585 = vmax.f32 %v467, 0.0
        %v586 = vmax.f32 %v472, 0.0
        %v587 = vmax.f32 %v475, 0.0
        %v588 = vmax.f32 %v480, 0.0
        %v589 = vmax.f32 %v483, 0.0
        %v590 = vmax.f32 %v488, 0.0
        %v591 = vmax.f32 %v491, 0.0
        %v592 = vmax.f32 %v496, 0.0
        %v593 = vmax.f32 %v499, 0.0
        %v594 = vmax.f32 %v504, 0.0
        %v595 = vmax.f32 %v507, 0.0
        %v596 = vmax.f32 %v512, 0.0
        %v597 = vmax.f32 %v515, 0.0
        %v598 = vmax.f32 %v520, 0.0
        %v599 = vmax.f32 %v523, 0.0
        %v600 = vmax.f32 %v528, 0.0
        %v601 = vmax.f32 %v531, 0.0
        %v602 = vmax.f32 %v536, 0.0
        %v603 = vmax.f32 %v539, 0.0
        %v604 = vmax.f32 %v544, 0.0
        %v605 = vmax.f32 %v547, 0.0
        %v606 = vmax.f32 %v552, 0.0
        %v607 = vmax.f32 %v555, 0.0
        %v608 = vmax.f32 %v560, 0.0
        %v609 = vmax.f32 %v563, 0.0
        %v610 = vmax.f32 %v568, 0.0
        %v611 = vmax.f32 %v571, 0.0
        %v612 = vmax.f32 %v576, 0.0
        %v613 = vmax.f32 %v579, 0.0
        %614 = vst.msk [vmem:[#allocation2] sm:$0xff] %vm372, 0.0
        %615 = vst.msk [vmem:[#allocation2 + $0x8] sm:$0xff] %vm372, 0.0
        %vm616 = vcmask 257024
        %617 = vst.msk [vmem:[#allocation2 + $0x10] sm:$0xf] %vm616, 0.0
        %s618 = scalar_lea.vmem [#allocation2], 216
        %619 = vst.msk [vmem:[%s618] sm:$0xff] %vm372, 0.0
        %620 = vst.msk [vmem:[%s618 + $0x8] sm:$0xff] %vm372, 0.0
        %621 = vst.msk [vmem:[%s618 + $0x10] sm:$0xf] %vm616, 0.0
        %vm622 = vcmask 253952
        %623 = vst.msk [vmem:[#allocation2] sm:$0x1] %vm622, 0.0
        %624 = vst.msk [vmem:[#allocation2 + $0x18] sm:$0x1] %vm622, 0.0
        %625 = vst.msk [vmem:[#allocation2 + $0x30] sm:$0x1] %vm622, 0.0
        %626 = vst.msk [vmem:[#allocation2 + $0x48] sm:$0x1] %vm622, 0.0
        %627 = vst.msk [vmem:[#allocation2 + $0x60] sm:$0x1] %vm622, 0.0
        %628 = vst.msk [vmem:[#allocation2 + $0x78] sm:$0x1] %vm622, 0.0
        %629 = vst.msk [vmem:[#allocation2 + $0x90] sm:$0x1] %vm622, 0.0
        %630 = vst.msk [vmem:[#allocation2 + $0xa8] sm:$0x1] %vm622, 0.0
        %631 = vst.msk [vmem:[#allocation2 + $0xc0] sm:$0x1] %vm622, 0.0
        %632 = vst.msk [vmem:[#allocation2 + $0xd8] sm:$0x1] %vm622, 0.0
        %633 = vst.msk [vmem:[#allocation2 + $0xf0] sm:$0x1] %vm622, 0.0
        %634 = vst.msk [vmem:[#allocation2 + $0x108] sm:$0x1] %vm622, 0.0
        %635 = vst.msk [vmem:[#allocation2 + $0x120] sm:$0x1] %vm622, 0.0
        %636 = vst.msk [vmem:[#allocation2 + $0x138] sm:$0x1] %vm622, 0.0
        %637 = vst.msk [vmem:[#allocation2 + $0x150] sm:$0x1] %vm622, 0.0
        %638 = vst.msk [vmem:[#allocation2 + $0x168] sm:$0x1] %vm622, 0.0
        %639 = vst.msk [vmem:[#allocation2 + $0x180] sm:$0x1] %vm622, 0.0
        %640 = vst.msk [vmem:[#allocation2 + $0x198] sm:$0x1] %vm622, 0.0
        %641 = vst.msk [vmem:[#allocation2 + $0x1b0] sm:$0x1] %vm622, 0.0
        %642 = vst.msk [vmem:[#allocation2 + $0x1c8] sm:$0x1] %vm622, 0.0
        %643 = vst.msk [vmem:[#allocation2 + $0x9] sm:$0x1] %vm622, 0.0
        %644 = vst.msk [vmem:[#allocation2 + $0x21] sm:$0x1] %vm622, 0.0
        %645 = vst.msk [vmem:[#allocation2 + $0x39] sm:$0x1] %vm622, 0.0
        %646 = vst.msk [vmem:[#allocation2 + $0x51] sm:$0x1] %vm622, 0.0
        %647 = vst.msk [vmem:[#allocation2 + $0x69] sm:$0x1] %vm622, 0.0
        %648 = vst.msk [vmem:[#allocation2 + $0x81] sm:$0x1] %vm622, 0.0
        %649 = vst.msk [vmem:[#allocation2 + $0x99] sm:$0x1] %vm622, 0.0
        %650 = vst.msk [vmem:[#allocation2 + $0xb1] sm:$0x1] %vm622, 0.0
        %651 = vst.msk [vmem:[#allocation2 + $0xc9] sm:$0x1] %vm622, 0.0
        %652 = vst.msk [vmem:[#allocation2 + $0xe1] sm:$0x1] %vm622, 0.0
        %653 = vst.msk [vmem:[#allocation2 + $0xf9] sm:$0x1] %vm622, 0.0
        %654 = vst.msk [vmem:[#allocation2 + $0x111] sm:$0x1] %vm622, 0.0
        %655 = vst.msk [vmem:[#allocation2 + $0x129] sm:$0x1] %vm622, 0.0
        %656 = vst.msk [vmem:[#allocation2 + $0x141] sm:$0x1] %vm622, 0.0
        %657 = vst.msk [vmem:[#allocation2 + $0x159] sm:$0x1] %vm622, 0.0
        %658 = vst.msk [vmem:[#allocation2 + $0x171] sm:$0x1] %vm622, 0.0
        %659 = vst.msk [vmem:[#allocation2 + $0x189] sm:$0x1] %vm622, 0.0
        %660 = vst.msk [vmem:[#allocation2 + $0x1a1] sm:$0x1] %vm622, 0.0
        %661 = vst.msk [vmem:[#allocation2 + $0x1b9] sm:$0x1] %vm622, 0.0
        %662 = vst.msk [vmem:[#allocation2 + $0x1d1] sm:$0x1] %vm622, 0.0
        %s663 = scalar_lea.vmem [#allocation2], 240
        %664 = vst.msk [vmem:[%s663] sm:$0xff] %vm372, 0.0
        %665 = vst.msk [vmem:[%s663 + $0x8] sm:$0xff] %vm372, 0.0
        %666 = vst.msk [vmem:[%s663 + $0x10] sm:$0xf] %vm616, 0.0
        %s667 = scalar_lea.vmem [#allocation2], 456
        %668 = vst.msk [vmem:[%s667] sm:$0xff] %vm372, 0.0
        %669 = vst.msk [vmem:[%s667 + $0x8] sm:$0xff] %vm372, 0.0
        %670 = vst.msk [vmem:[%s667 + $0x10] sm:$0xf] %vm616, 0.0
        %671 = vst.msk [vmem:[#allocation2 + $0xa] sm:$0x1] %vm622, 0.0
        %672 = vst.msk [vmem:[#allocation2 + $0x22] sm:$0x1] %vm622, 0.0
        %673 = vst.msk [vmem:[#allocation2 + $0x3a] sm:$0x1] %vm622, 0.0
        %674 = vst.msk [vmem:[#allocation2 + $0x52] sm:$0x1] %vm622, 0.0
        %675 = vst.msk [vmem:[#allocation2 + $0x6a] sm:$0x1] %vm622, 0.0
        %676 = vst.msk [vmem:[#allocation2 + $0x82] sm:$0x1] %vm622, 0.0
        %677 = vst.msk [vmem:[#allocation2 + $0x9a] sm:$0x1] %vm622, 0.0
        %678 = vst.msk [vmem:[#allocation2 + $0xb2] sm:$0x1] %vm622, 0.0
        %679 = vst.msk [vmem:[#allocation2 + $0xca] sm:$0x1] %vm622, 0.0
        %680 = vst.msk [vmem:[#allocation2 + $0xe2] sm:$0x1] %vm622, 0.0
        %681 = vst.msk [vmem:[#allocation2 + $0xfa] sm:$0x1] %vm622, 0.0
        %682 = vst.msk [vmem:[#allocation2 + $0x112] sm:$0x1] %vm622, 0.0
        %683 = vst.msk [vmem:[#allocation2 + $0x12a] sm:$0x1] %vm622, 0.0
        %684 = vst.msk [vmem:[#allocation2 + $0x142] sm:$0x1] %vm622, 0.0
        %685 = vst.msk [vmem:[#allocation2 + $0x15a] sm:$0x1] %vm622, 0.0
        %686 = vst.msk [vmem:[#allocation2 + $0x172] sm:$0x1] %vm622, 0.0
        %687 = vst.msk [vmem:[#allocation2 + $0x18a] sm:$0x1] %vm622, 0.0
        %688 = vst.msk [vmem:[#allocation2 + $0x1a2] sm:$0x1] %vm622, 0.0
        %689 = vst.msk [vmem:[#allocation2 + $0x1ba] sm:$0x1] %vm622, 0.0
        %690 = vst.msk [vmem:[#allocation2 + $0x1d2] sm:$0x1] %vm622, 0.0
        %691 = vst.msk [vmem:[#allocation2 + $0x13] sm:$0x1] %vm622, 0.0
        %692 = vst.msk [vmem:[#allocation2 + $0x2b] sm:$0x1] %vm622, 0.0
        %693 = vst.msk [vmem:[#allocation2 + $0x43] sm:$0x1] %vm622, 0.0
        %694 = vst.msk [vmem:[#allocation2 + $0x5b] sm:$0x1] %vm622, 0.0
        %695 = vst.msk [vmem:[#allocation2 + $0x73] sm:$0x1] %vm622, 0.0
        %696 = vst.msk [vmem:[#allocation2 + $0x8b] sm:$0x1] %vm622, 0.0
        %697 = vst.msk [vmem:[#allocation2 + $0xa3] sm:$0x1] %vm622, 0.0
        %698 = vst.msk [vmem:[#allocation2 + $0xbb] sm:$0x1] %vm622, 0.0
        %699 = vst.msk [vmem:[#allocation2 + $0xd3] sm:$0x1] %vm622, 0.0
        %700 = vst.msk [vmem:[#allocation2 + $0xeb] sm:$0x1] %vm622, 0.0
        %701 = vst.msk [vmem:[#allocation2 + $0x103] sm:$0x1] %vm622, 0.0
        %702 = vst.msk [vmem:[#allocation2 + $0x11b] sm:$0x1] %vm622, 0.0
        %703 = vst.msk [vmem:[#allocation2 + $0x133] sm:$0x1] %vm622, 0.0
        %704 = vst.msk [vmem:[#allocation2 + $0x14b] sm:$0x1] %vm622, 0.0
        %705 = vst.msk [vmem:[#allocation2 + $0x163] sm:$0x1] %vm622, 0.0
        %706 = vst.msk [vmem:[#allocation2 + $0x17b] sm:$0x1] %vm622, 0.0
        %707 = vst.msk [vmem:[#allocation2 + $0x193] sm:$0x1] %vm622, 0.0
        %708 = vst.msk [vmem:[#allocation2 + $0x1ab] sm:$0x1] %vm622, 0.0
        %709 = vst.msk [vmem:[#allocation2 + $0x1c3] sm:$0x1] %vm622, 0.0
        %710 = vst.msk [vmem:[#allocation2 + $0x1db] sm:$0x1] %vm622, 0.0
        %s711 = scalar_lea.vmem [#allocation2], 24
        %712 = vst.msk [vmem:[%s711 + $0x1] sm:$0xff] %vm372, %v582
        %713 = vst.msk [vmem:[%s711 + $0x19] sm:$0xff] %vm372, %v584
        %714 = vst.msk [vmem:[%s711 + $0x31] sm:$0xff] %vm372, %v586
        %715 = vst.msk [vmem:[%s711 + $0x49] sm:$0xff] %vm372, %v588
        %716 = vst.msk [vmem:[%s711 + $0x61] sm:$0xff] %vm372, %v590
        %717 = vst.msk [vmem:[%s711 + $0x79] sm:$0xff] %vm372, %v592
        %718 = vst.msk [vmem:[%s711 + $0x91] sm:$0xff] %vm372, %v594
        %719 = vst.msk [vmem:[%s711 + $0xa9] sm:$0xff] %vm372, %v596
        %720 = vst.msk [vmem:[%s711 + $0xb] sm:$0xff] %vm372, %v583
        %721 = vst.msk [vmem:[%s711 + $0x23] sm:$0xff] %vm372, %v585
        %722 = vst.msk [vmem:[%s711 + $0x3b] sm:$0xff] %vm372, %v587
        %723 = vst.msk [vmem:[%s711 + $0x53] sm:$0xff] %vm372, %v589
        %724 = vst.msk [vmem:[%s711 + $0x6b] sm:$0xff] %vm372, %v591
        %725 = vst.msk [vmem:[%s711 + $0x83] sm:$0xff] %vm372, %v593
        %726 = vst.msk [vmem:[%s711 + $0x9b] sm:$0xff] %vm372, %v595
        %727 = vst.msk [vmem:[%s711 + $0xb3] sm:$0xff] %vm372, %v597
        %s728 = scalar_lea.vmem [#allocation2], 264
        %729 = vst.msk [vmem:[%s728 + $0x1] sm:$0xff] %vm372, %v598
        %730 = vst.msk [vmem:[%s728 + $0x19] sm:$0xff] %vm372, %v600
        %731 = vst.msk [vmem:[%s728 + $0x31] sm:$0xff] %vm372, %v602
        %732 = vst.msk [vmem:[%s728 + $0x49] sm:$0xff] %vm372, %v604
        %733 = vst.msk [vmem:[%s728 + $0x61] sm:$0xff] %vm372, %v606
        %734 = vst.msk [vmem:[%s728 + $0x79] sm:$0xff] %vm372, %v608
        %735 = vst.msk [vmem:[%s728 + $0x91] sm:$0xff] %vm372, %v610
        %736 = vst.msk [vmem:[%s728 + $0xa9] sm:$0xff] %vm372, %v612
        %737 = vst.msk [vmem:[%s728 + $0xb] sm:$0xff] %vm372, %v599
        %738 = vst.msk [vmem:[%s728 + $0x23] sm:$0xff] %vm372, %v601
        %739 = vst.msk [vmem:[%s728 + $0x3b] sm:$0xff] %vm372, %v603
        %740 = vst.msk [vmem:[%s728 + $0x53] sm:$0xff] %vm372, %v605
        %741 = vst.msk [vmem:[%s728 + $0x6b] sm:$0xff] %vm372, %v607
        %742 = vst.msk [vmem:[%s728 + $0x83] sm:$0xff] %vm372, %v609
        %743 = vst.msk [vmem:[%s728 + $0x9b] sm:$0xff] %vm372, %v611
        %744 = vst.msk [vmem:[%s728 + $0xb3] sm:$0xff] %vm372, %v613
        %v745 = vld [vmem:[#allocation2 + $0x22] sm:$0xff]
        %v746 = vld [vmem:[#allocation2 + $0x3a] sm:$0xff]
        %v747 = vld [vmem:[#allocation2 + $0x52] sm:$0xff]
        %v748 = vld [vmem:[#allocation2 + $0x6a] sm:$0xff]
        %v749 = vld [vmem:[#allocation2 + $0x82] sm:$0xff]
        %v750 = vld [vmem:[#allocation2 + $0x9a] sm:$0xff]
        %v751 = vld [vmem:[#allocation2 + $0xb2] sm:$0xff]
        %v752 = vld [vmem:[#allocation2 + $0xca] sm:$0xff]
        %v753 = vld [vmem:[#allocation2 + $0xfa] sm:$0xff]
        %v754 = vld [vmem:[#allocation2 + $0x112] sm:$0xff]
        %v755 = vld [vmem:[#allocation2 + $0x12a] sm:$0xff]
        %v756 = vld [vmem:[#allocation2 + $0x142] sm:$0xff]
        %v757 = vld [vmem:[#allocation2 + $0x15a] sm:$0xff]
        %v758 = vld [vmem:[#allocation2 + $0x172] sm:$0xff]
        %v759 = vld [vmem:[#allocation2 + $0x18a] sm:$0xff]
        %v760 = vld [vmem:[#allocation2 + $0x1a2] sm:$0xff]
        %v761 = vld [vmem:[#allocation2 + $0x1ba] sm:$0xff]
        %v762 = vld [vmem:[#allocation2 + $0x19] sm:$0xff]
        %v763 = vld [vmem:[#allocation2 + $0x31] sm:$0xff]
        %v764 = vld [vmem:[#allocation2 + $0x49] sm:$0xff]
        %v765 = vld [vmem:[#allocation2 + $0x61] sm:$0xff]
        %v766 = vld [vmem:[#allocation2 + $0x79] sm:$0xff]
        %v767 = vld [vmem:[#allocation2 + $0x91] sm:$0xff]
        %v768 = vld [vmem:[#allocation2 + $0xa9] sm:$0xff]
        %v769 = vld [vmem:[#allocation2 + $0xc1] sm:$0xff]
        %v770 = vld [vmem:[#allocation2 + $0xf1] sm:$0xff]
        %v771 = vld [vmem:[#allocation2 + $0x109] sm:$0xff]
        %v772 = vld [vmem:[#allocation2 + $0x121] sm:$0xff]
        %v773 = vld [vmem:[#allocation2 + $0x139] sm:$0xff]
        %v774 = vld [vmem:[#allocation2 + $0x151] sm:$0xff]
        %v775 = vld [vmem:[#allocation2 + $0x169] sm:$0xff]
        %v776 = vld [vmem:[#allocation2 + $0x181] sm:$0xff]
        %v777 = vld [vmem:[#allocation2 + $0x199] sm:$0xff]
        %v778 = vld [vmem:[#allocation2 + $0x1b1] sm:$0xff]
        %v779 = vld [vmem:[#allocation2 + $0x23] sm:$0xff]
        %v780 = vld [vmem:[#allocation2 + $0x3b] sm:$0xff]
        %v781 = vld [vmem:[#allocation2 + $0x53] sm:$0xff]
        %v782 = vld [vmem:[#allocation2 + $0x6b] sm:$0xff]
        %v783 = vld [vmem:[#allocation2 + $0x83] sm:$0xff]
        %v784 = vld [vmem:[#allocation2 + $0x9b] sm:$0xff]
        %v785 = vld [vmem:[#allocation2 + $0xb3] sm:$0xff]
        %v786 = vld [vmem:[#allocation2 + $0xcb] sm:$0xff]
        %v787 = vld [vmem:[#allocation2 + $0xfb] sm:$0xff]
        %v788 = vld [vmem:[#allocation2 + $0x113] sm:$0xff]
        %v789 = vld [vmem:[#allocation2 + $0x12b] sm:$0xff]
        %v790 = vld [vmem:[#allocation2 + $0x143] sm:$0xff]
        %v791 = vld [vmem:[#allocation2 + $0x15b] sm:$0xff]
        %v792 = vld [vmem:[#allocation2 + $0x173] sm:$0xff]
        %v793 = vld [vmem:[#allocation2 + $0x18b] sm:$0xff]
        %v794 = vld [vmem:[#allocation2 + $0x1a3] sm:$0xff]
        %v795 = vld [vmem:[#allocation2 + $0x1bb] sm:$0xff]
        %804 = vrot.lane.b32.xlu0 %v770, 32
        %v805 = vpop.permute.xlu0 %804
        %806 = vrot.lane.b32.xlu0 %v771, 32
        %v807 = vpop.permute.xlu0 %806
        %808 = vrot.lane.b32.xlu0 %v772, 32
        %v809 = vpop.permute.xlu0 %808
        %810 = vrot.lane.b32.xlu0 %v773, 32
        %v811 = vpop.permute.xlu0 %810
        %812 = vrot.lane.b32.xlu0 %v774, 32
        %v813 = vpop.permute.xlu0 %812
        %814 = vrot.lane.b32.xlu0 %v775, 32
        %v815 = vpop.permute.xlu0 %814
        %816 = vrot.lane.b32.xlu0 %v776, 32
        %v817 = vpop.permute.xlu0 %816
        %818 = vrot.lane.b32.xlu0 %v777, 32
        %v819 = vpop.permute.xlu0 %818
        %836 = vrot.lane.b32.xlu0 %v787, 64
        %v837 = vpop.permute.xlu0 %836
        %838 = vrot.lane.b32.xlu0 %v788, 64
        %v839 = vpop.permute.xlu0 %838
        %840 = vrot.lane.b32.xlu0 %v789, 64
        %v841 = vpop.permute.xlu0 %840
        %842 = vrot.lane.b32.xlu0 %v790, 64
        %v843 = vpop.permute.xlu0 %842
        %844 = vrot.lane.b32.xlu0 %v791, 64
        %v845 = vpop.permute.xlu0 %844
        %846 = vrot.lane.b32.xlu0 %v792, 64
        %v847 = vpop.permute.xlu0 %846
        %848 = vrot.lane.b32.xlu0 %v793, 64
        %v849 = vpop.permute.xlu0 %848
        %850 = vrot.lane.b32.xlu0 %v794, 64
        %v851 = vpop.permute.xlu0 %850
        %868 = vrot.lane.b32.xlu0 %v745, 96
        %v869 = vpop.permute.xlu0 %868
        %870 = vrot.lane.b32.xlu0 %v746, 96
        %v871 = vpop.permute.xlu0 %870
        %872 = vrot.lane.b32.xlu0 %v747, 96
        %v873 = vpop.permute.xlu0 %872
        %874 = vrot.lane.b32.xlu0 %v748, 96
        %v875 = vpop.permute.xlu0 %874
        %876 = vrot.lane.b32.xlu0 %v749, 96
        %v877 = vpop.permute.xlu0 %876
        %878 = vrot.lane.b32.xlu0 %v750, 96
        %v879 = vpop.permute.xlu0 %878
        %880 = vrot.lane.b32.xlu0 %v751, 96
        %v881 = vpop.permute.xlu0 %880
        %882 = vrot.lane.b32.xlu0 %v752, 96
        %v883 = vpop.permute.xlu0 %882
        %900 = vrot.lane.b32.xlu0 %v779, 32
        %v901 = vpop.permute.xlu0 %900
        %902 = vrot.lane.b32.xlu0 %v780, 32
        %v903 = vpop.permute.xlu0 %902
        %904 = vrot.lane.b32.xlu0 %v781, 32
        %v905 = vpop.permute.xlu0 %904
        %906 = vrot.lane.b32.xlu0 %v782, 32
        %v907 = vpop.permute.xlu0 %906
        %908 = vrot.lane.b32.xlu0 %v783, 32
        %v909 = vpop.permute.xlu0 %908
        %910 = vrot.lane.b32.xlu0 %v784, 32
        %v911 = vpop.permute.xlu0 %910
        %912 = vrot.lane.b32.xlu0 %v785, 32
        %v913 = vpop.permute.xlu0 %912
        %914 = vrot.lane.b32.xlu0 %v786, 32
        %v915 = vpop.permute.xlu0 %914
        %932 = vrot.lane.b32.xlu0 %v754, 64
        %v933 = vpop.permute.xlu0 %932
        %934 = vrot.lane.b32.xlu0 %v755, 64
        %v935 = vpop.permute.xlu0 %934
        %936 = vrot.lane.b32.xlu0 %v756, 64
        %v937 = vpop.permute.xlu0 %936
        %938 = vrot.lane.b32.xlu0 %v757, 64
        %v939 = vpop.permute.xlu0 %938
        %940 = vrot.lane.b32.xlu0 %v758, 64
        %v941 = vpop.permute.xlu0 %940
        %942 = vrot.lane.b32.xlu0 %v759, 64
        %v943 = vpop.permute.xlu0 %942
        %944 = vrot.lane.b32.xlu0 %v760, 64
        %v945 = vpop.permute.xlu0 %944
        %946 = vrot.lane.b32.xlu0 %v761, 64
        %v947 = vpop.permute.xlu0 %946
        %957 = vrot.lane.b32.xlu0 %v771, 96
        %v958 = vpop.permute.xlu0 %957
        %959 = vrot.lane.b32.xlu0 %v772, 96
        %v960 = vpop.permute.xlu0 %959
        %961 = vrot.lane.b32.xlu0 %v773, 96
        %v962 = vpop.permute.xlu0 %961
        %963 = vrot.lane.b32.xlu0 %v774, 96
        %v964 = vpop.permute.xlu0 %963
        %965 = vrot.lane.b32.xlu0 %v775, 96
        %v966 = vpop.permute.xlu0 %965
        %967 = vrot.lane.b32.xlu0 %v776, 96
        %v968 = vpop.permute.xlu0 %967
        %969 = vrot.lane.b32.xlu0 %v777, 96
        %v970 = vpop.permute.xlu0 %969
        %971 = vrot.lane.b32.xlu0 %v778, 96
        %v972 = vpop.permute.xlu0 %971
        %v981 = vsel %vm372, %v753, %v805
        %v982 = vsel %vm372, %v754, %v807
        %v983 = vsel %vm372, %v755, %v809
        %v984 = vsel %vm372, %v756, %v811
        %v985 = vsel %vm372, %v757, %v813
        %v986 = vsel %vm372, %v758, %v815
        %v987 = vsel %vm372, %v759, %v817
        %v988 = vsel %vm372, %v760, %v819
        %vm989 = vcmask 523264
        %v990 = vsel %vm989, %v981, %v837
        %v991 = vsel %vm989, %v982, %v839
        %v992 = vsel %vm989, %v983, %v841
        %v993 = vsel %vm989, %v984, %v843
        %v994 = vsel %vm989, %v985, %v845
        %v995 = vsel %vm989, %v986, %v847
        %v996 = vsel %vm989, %v987, %v849
        %v997 = vsel %vm989, %v988, %v851
        %vm998 = vcmask 785408
        %v999 = vsel %vm998, %v990, %v869
        %v1000 = vsel %vm998, %v991, %v871
        %v1001 = vsel %vm998, %v992, %v873
        %v1002 = vsel %vm998, %v993, %v875
        %v1003 = vsel %vm998, %v994, %v877
        %v1004 = vsel %vm998, %v995, %v879
        %v1005 = vsel %vm998, %v996, %v881
        %v1006 = vsel %vm998, %v997, %v883
        %v1007 = vsel %vm372, %v762, %v901
        %v1008 = vsel %vm372, %v763, %v903
        %v1009 = vsel %vm372, %v764, %v905
        %v1010 = vsel %vm372, %v765, %v907
        %v1011 = vsel %vm372, %v766, %v909
        %v1012 = vsel %vm372, %v767, %v911
        %v1013 = vsel %vm372, %v768, %v913
        %v1014 = vsel %vm372, %v769, %v915
        %v1015 = vsel %vm989, %v1007, %v933
        %v1016 = vsel %vm989, %v1008, %v935
        %v1017 = vsel %vm989, %v1009, %v937
        %v1018 = vsel %vm989, %v1010, %v939
        %v1019 = vsel %vm989, %v1011, %v941
        %v1020 = vsel %vm989, %v1012, %v943
        %v1021 = vsel %vm989, %v1013, %v945
        %v1022 = vsel %vm989, %v1014, %v947
        %v1023 = vsel %vm998, %v1015, %v958
        %v1024 = vsel %vm998, %v1016, %v960
        %v1025 = vsel %vm998, %v1017, %v962
        %v1026 = vsel %vm998, %v1018, %v964
        %v1027 = vsel %vm998, %v1019, %v966
        %v1028 = vsel %vm998, %v1020, %v968
        %v1029 = vsel %vm998, %v1021, %v970
        %v1030 = vsel %vm998, %v1022, %v972
        %v1031 = vpack.c.bf16 %v1000, %v999
        %v1032 = vpack.c.bf16 %v1024, %v1023
        %v1033 = vpack.c.bf16 %v789, %v788
        %v1034 = vpack.c.bf16 %v1002, %v1001
        %v1035 = vpack.c.bf16 %v1026, %v1025
        %v1036 = vpack.c.bf16 %v791, %v790
        %v1037 = vpack.c.bf16 %v1004, %v1003
        %v1038 = vpack.c.bf16 %v1028, %v1027
        %v1039 = vpack.c.bf16 %v793, %v792
        %v1040 = vpack.c.bf16 %v1006, %v1005
        %v1041 = vpack.c.bf16 %v1030, %v1029
        %v1042 = vpack.c.bf16 %v795, %v794
        %v1043 = vld [vmem:[%s2] sm:$0xf]
        %v1044 = vld [vmem:[%s2 + $0x4] sm:$0xf]
        %v1045 = vld [vmem:[%s2 + $0x8] sm:$0xf]
        %v1046 = vld [vmem:[%s2 + $0xc] sm:$0xf]
        %v1047 = vld [vmem:[%s2 + $0x10] sm:$0xf]
        %v1048 = vld [vmem:[%s2 + $0x14] sm:$0xf]
        %v1049 = vld [vmem:[%s2 + $0x18] sm:$0xf]
        %v1050 = vld [vmem:[%s2 + $0x1c] sm:$0xf]
        %v1051 = vld [vmem:[%s2 + $0x20] sm:$0xf]
        %v1052 = vld [vmem:[%s2 + $0x24] sm:$0xf]
        %v1053 = vld [vmem:[%s2 + $0x28] sm:$0xf]
        %v1054 = vld [vmem:[%s2 + $0x2c] sm:$0xf]
        %v1055 = vld [vmem:[%s2 + $0x30] sm:$0xf]
        %v1056 = vld [vmem:[%s2 + $0x34] sm:$0xf]
        %v1057 = vld [vmem:[%s2 + $0x38] sm:$0xf]
        %v1058 = vld [vmem:[%s2 + $0x3c] sm:$0xf]
        %v1059 = vld [vmem:[%s2 + $0x40] sm:$0xf]
        %v1060 = vld [vmem:[%s2 + $0x44] sm:$0xf]
        %v1061 = vld [vmem:[%s2 + $0x48] sm:$0xf]
        %v1062 = vld [vmem:[%s2 + $0x4c] sm:$0xf]
        %v1063 = vld [vmem:[%s2 + $0x50] sm:$0xf]
        %v1064 = vld [vmem:[%s2 + $0x54] sm:$0xf]
        %v1065 = vld [vmem:[%s2 + $0x58] sm:$0xf]
        %v1066 = vld [vmem:[%s2 + $0x5c] sm:$0xf]
        %v1067 = vld [vmem:[%s2 + $0x60] sm:$0xf]
        %v1068 = vld [vmem:[%s2 + $0x64] sm:$0xf]
        %v1069 = vld [vmem:[%s2 + $0x68] sm:$0xf]
        %v1070 = vld [vmem:[%s2 + $0x6c] sm:$0xf]
        %v1071 = vld [vmem:[%s2 + $0x70] sm:$0xf]
        %v1072 = vld [vmem:[%s2 + $0x74] sm:$0xf]
        %v1073 = vld [vmem:[%s2 + $0x78] sm:$0xf]
        %v1074 = vld [vmem:[%s2 + $0x7c] sm:$0xf]
        %v1075 = vld [vmem:[%s2 + $0x80] sm:$0xf]
        %v1076 = vld [vmem:[%s2 + $0x84] sm:$0xf]
        %v1077 = vld [vmem:[%s2 + $0x88] sm:$0xf]
        %v1078 = vld [vmem:[%s2 + $0x8c] sm:$0xf]
        %v1115 = vunpack.c.l.b16 %v1043
        %v1116 = vunpack.c.l.b16 %v1044
        %v1117 = vunpack.c.l.b16 %v1045
        %v1118 = vunpack.c.l.b16 %v1046
        %v1119 = vunpack.c.l.b16 %v1047
        %v1120 = vunpack.c.l.b16 %v1048
        %v1121 = vunpack.c.l.b16 %v1049
        %v1122 = vunpack.c.l.b16 %v1050
        %v1123 = vunpack.c.l.b16 %v1051
        %v1124 = vunpack.c.l.b16 %v1052
        %v1125 = vunpack.c.l.b16 %v1053
        %v1126 = vunpack.c.l.b16 %v1054
        %v1127 = vunpack.c.l.b16 %v1055
        %v1128 = vunpack.c.l.b16 %v1056
        %v1129 = vunpack.c.l.b16 %v1057
        %v1130 = vunpack.c.l.b16 %v1058
        %v1131 = vunpack.c.l.b16 %v1059
        %v1132 = vunpack.c.l.b16 %v1060
        %v1133 = vunpack.c.l.b16 %v1061
        %v1134 = vunpack.c.l.b16 %v1062
        %v1135 = vunpack.c.l.b16 %v1063
        %v1136 = vunpack.c.l.b16 %v1064
        %v1137 = vunpack.c.l.b16 %v1065
        %v1138 = vunpack.c.l.b16 %v1066
        %v1139 = vunpack.c.l.b16 %v1067
        %v1140 = vunpack.c.l.b16 %v1068
        %v1141 = vunpack.c.l.b16 %v1069
        %v1142 = vunpack.c.l.b16 %v1070
        %v1143 = vunpack.c.l.b16 %v1071
        %v1144 = vunpack.c.l.b16 %v1072
        %v1145 = vunpack.c.l.b16 %v1073
        %v1146 = vunpack.c.l.b16 %v1074
        %v1147 = vunpack.c.l.b16 %v1075
        %v1148 = vunpack.c.l.b16 %v1076
        %v1149 = vunpack.c.l.b16 %v1077
        %v1150 = vunpack.c.l.b16 %v1078
        %v1151 = vpack.c.b16 %v1116, %v1115
        %v1152 = vpack.c.b16 %v1118, %v1117
        %v1153 = vpack.c.b16 %v1120, %v1119
        %v1154 = vpack.c.b16 %v1122, %v1121
        %v1155 = vpack.c.b16 %v1124, %v1123
        %v1156 = vpack.c.b16 %v1126, %v1125
        %v1157 = vpack.c.b16 %v1128, %v1127
        %v1158 = vpack.c.b16 %v1130, %v1129
        %v1159 = vpack.c.b16 %v1132, %v1131
        %v1160 = vpack.c.b16 %v1134, %v1133
        %v1161 = vpack.c.b16 %v1136, %v1135
        %v1162 = vpack.c.b16 %v1138, %v1137
        %v1163 = vpack.c.b16 %v1140, %v1139
        %v1164 = vpack.c.b16 %v1142, %v1141
        %v1165 = vpack.c.b16 %v1144, %v1143
        %v1166 = vpack.c.b16 %v1146, %v1145
        %v1167 = vpack.c.b16 %v1148, %v1147
        %v1168 = vpack.c.b16 %v1150, %v1149
        %v1188 = vsel %vm372, %v1033, 0
        %v1191 = vsel %vm372, %v1036, 0
        %v1194 = vsel %vm372, %v1039, 0
        %v1197 = vsel %vm372, %v1042, 0
        %1199 = vmatprep.subr.bf16.mxu0 0
        %1200 = vmatpush1.bf16.msra.mxu0 %v1151
        %1201 = vmatprep.subr.bf16.mxu0 0
        %1202 = vmatpush1.bf16.msra.mxu0 %v1152
        %1203 = vmatprep.subr.bf16.mxu0 0
        %1204 = vmatpush1.bf16.msra.mxu0 %v1153
        %1205 = vmatprep.subr.bf16.mxu0 0
        %1206 = vmatpush1.bf16.msra.mxu0 %v1154
        %1207 = vmatprep.subr.bf16.mxu0 0
        %1208 = vmatpush1.bf16.msra.mxu0 %v1155
        %1209 = vmatprep.subr.bf16.mxu0 0
        %1210 = vmatpush1.bf16.msra.mxu0 %v1156
        %1211 = vmatprep.subr.bf16.mxu0 0
        %1212 = vmatpush1.bf16.msra.mxu0 %v1157
        %1213 = vmatprep.subr.bf16.mxu0 0
        %1214 = vmatpush1.bf16.msra.mxu0 %v1158
        %1215 = vmatprep.subr.bf16.mxu0 0
        %1216 = vmatpush1.bf16.msra.mxu0 %v1159
        %1217 = vmatprep.subr.bf16.mxu0 0
        %1218 = vmatpush1.bf16.msra.mxu0 %v1160
        %1219 = vmatprep.subr.bf16.mxu0 0
        %1220 = vmatpush1.bf16.msra.mxu0 %v1161
        %1221 = vmatprep.subr.bf16.mxu0 0
        %1222 = vmatpush1.bf16.msra.mxu0 %v1162
        %1223 = vmatprep.subr.bf16.mxu0 0
        %1224 = vmatpush1.bf16.msra.mxu0 %v1163
        %1225 = vmatprep.subr.bf16.mxu0 0
        %1226 = vmatpush1.bf16.msra.mxu0 %v1164
        %1227 = vmatprep.subr.bf16.mxu0 0
        %1228 = vmatpush1.bf16.msra.mxu0 %v1165
        %1229 = vmatprep.subr.bf16.mxu0 0
        %1230 = vmatpush1.bf16.msra.mxu0 %v1166
        %1231 = vmatprep.mubr.bf16.mxu0 %v1032
        %1232 = vmatmul.mubr.bf16.gmra.mrb[0].mxu0 %v1031
        %v1233 = vpop.f32.mrb[0].mxu0
        %v1234 = vadd.f32 0.0, %v1233
        %v1235 = vpop.f32.mrb[0].mxu0
        %v1236 = vpop.f32.mrb[0].mxu0
        %v1237 = vadd.f32 0.0, %v1236
        %v1238 = vpop.f32.mrb[0].mxu0
        %1239 = vmatprep.mubr.bf16.mxu0 %v1035
        %1240 = vmatmul.mubr.bf16.gmra.mrb[0].mxu0 %v1034
        %v1241 = vpop.f32.mrb[0].mxu0
        %v1242 = vadd.f32 0.0, %v1241
        %v1243 = vpop.f32.mrb[0].mxu0
        %v1244 = vpop.f32.mrb[0].mxu0
        %v1245 = vadd.f32 0.0, %v1244
        %v1246 = vpop.f32.mrb[0].mxu0
        %1247 = vmatprep.mubr.bf16.mxu0 %v1038
        %1248 = vmatmul.mubr.bf16.gmra.mrb[0].mxu0 %v1037
        %v1249 = vpop.f32.mrb[0].mxu0
        %v1250 = vadd.f32 0.0, %v1249
        %v1251 = vpop.f32.mrb[0].mxu0
        %v1252 = vpop.f32.mrb[0].mxu0
        %v1253 = vadd.f32 0.0, %v1252
        %v1254 = vpop.f32.mrb[0].mxu0
        %1255 = vmatprep.mubr.bf16.mxu0 %v1041
        %1256 = vmatmul.mubr.bf16.gmra.mrb[0].mxu0 %v1040
        %v1257 = vpop.f32.mrb[0].mxu0
        %v1258 = vadd.f32 0.0, %v1257
        %v1259 = vpop.f32.mrb[0].mxu0
        %v1260 = vpop.f32.mrb[0].mxu0
        %v1261 = vadd.f32 0.0, %v1260
        %v1262 = vpop.f32.mrb[0].mxu0
        %1263 = vdwg.mxu0
        %1264 = vmatprep.subr.bf16.mxu0 0
        %1265 = vmatpush1.bf16.msra.mxu0 %v1167
        %1266 = vmatprep.subr.bf16.mxu0 0
        %1267 = vmatpush1.bf16.msra.mxu0 %v1168
        %1268 = vmatprep.subr.bf16.mxu0 0
        %1269 = vmatpush1.bf16.msra.mxu0 0
        %1270 = vmatprep.subr.bf16.mxu0 0
        %1271 = vmatpush1.bf16.msra.mxu0 0
        %1272 = vmatprep.subr.bf16.mxu0 0
        %1273 = vmatpush1.bf16.msra.mxu0 0
        %1274 = vmatprep.subr.bf16.mxu0 0
        %1275 = vmatpush1.bf16.msra.mxu0 0
        %1276 = vmatprep.subr.bf16.mxu0 0
        %1277 = vmatpush1.bf16.msra.mxu0 0
        %1278 = vmatprep.subr.bf16.mxu0 0
        %1279 = vmatpush1.bf16.msra.mxu0 0
        %1280 = vmatprep.subr.bf16.mxu0 0
        %1281 = vmatpush1.bf16.msra.mxu0 0
        %1282 = vmatprep.subr.bf16.mxu0 0
        %1283 = vmatpush1.bf16.msra.mxu0 0
        %1284 = vmatprep.subr.bf16.mxu0 0
        %1285 = vmatpush1.bf16.msra.mxu0 0
        %1286 = vmatprep.subr.bf16.mxu0 0
        %1287 = vmatpush1.bf16.msra.mxu0 0
        %1288 = vmatprep.subr.bf16.mxu0 0
        %1289 = vmatpush1.bf16.msra.mxu0 0
        %1290 = vmatprep.subr.bf16.mxu0 0
        %1291 = vmatpush1.bf16.msra.mxu0 0
        %1292 = vmatprep.subr.bf16.mxu0 0
        %1293 = vmatpush1.bf16.msra.mxu0 0
        %1294 = vmatprep.subr.bf16.mxu0 0
        %1295 = vmatpush1.bf16.msra.mxu0 0
        %1296 = vmatprep.mubr.bf16.mxu0 0
        %1297 = vmatmul.mubr.bf16.gmra.mrb[0].mxu0 %v1188
        %v1298 = vpop.f32.mrb[0].mxu0
        %v1299 = vadd.f32 %v1234, %v1298
        %v1300 = vpop.f32.mrb[0].mxu0
        %v1301 = vpop.f32.mrb[0].mxu0
        %v1302 = vadd.f32 %v1237, %v1301
        %v1303 = vpop.f32.mrb[0].mxu0
        %1304 = vmatprep.mubr.bf16.mxu0 0
        %1305 = vmatmul.mubr.bf16.gmra.mrb[0].mxu0 %v1191
        %v1306 = vpop.f32.mrb[0].mxu0
        %v1307 = vadd.f32 %v1242, %v1306
        %v1308 = vpop.f32.mrb[0].mxu0
        %v1309 = vpop.f32.mrb[0].mxu0
        %v1310 = vadd.f32 %v1245, %v1309
        %v1311 = vpop.f32.mrb[0].mxu0
        %1312 = vmatprep.mubr.bf16.mxu0 0
        %1313 = vmatmul.mubr.bf16.gmra.mrb[0].mxu0 %v1194
        %v1314 = vpop.f32.mrb[0].mxu0
        %v1315 = vadd.f32 %v1250, %v1314
        %v1316 = vpop.f32.mrb[0].mxu0
        %v1317 = vpop.f32.mrb[0].mxu0
        %v1318 = vadd.f32 %v1253, %v1317
        %v1319 = vpop.f32.mrb[0].mxu0
        %1320 = vmatprep.mubr.bf16.mxu0 0
        %1321 = vmatmul.mubr.bf16.gmra.mrb[0].mxu0 %v1197
        %v1322 = vpop.f32.mrb[0].mxu0
        %v1323 = vadd.f32 %v1258, %v1322
        %v1324 = vpop.f32.mrb[0].mxu0
        %v1325 = vpop.f32.mrb[0].mxu0
        %v1326 = vadd.f32 %v1261, %v1325
        %v1327 = vpop.f32.mrb[0].mxu0
        %1328 = vdwg.mxu0
        %v1329 = vmax.f32 %v1299, 0.0
        %v1330 = vmax.f32 %v1302, 0.0
        %v1331 = vmax.f32 %v1307, 0.0
        %v1332 = vmax.f32 %v1310, 0.0
        %v1333 = vmax.f32 %v1315, 0.0
        %v1334 = vmax.f32 %v1318, 0.0
        %v1335 = vmax.f32 %v1323, 0.0
        %v1336 = vmax.f32 %v1326, 0.0
        %v1337 = vpack.c.bf16 %v1330, %v1329
        %v1338 = vpack.c.bf16 %v1332, %v1331
        %v1339 = vpack.c.bf16 %v1334, %v1333
        %v1340 = vpack.c.bf16 %v1336, %v1335
        %v1341 = vld [vmem:[%s3] sm:$0xf]
        %v1342 = vld [vmem:[%s3 + $0x4] sm:$0xf]
        %v1343 = vld [vmem:[%s3 + $0x8] sm:$0xf]
        %v1344 = vld [vmem:[%s3 + $0xc] sm:$0xf]
        %v1345 = vld [vmem:[%s4] sm:$0x1]
        %v1347 = vlaneseq
        %v1348 = vshrl.u32 %v1347, 7
        %v1349 = vsub.s32 0, %v1348
        %v1350 = vrot.slane %v1345, %v1349
        %v1356 = vunpack.c.l.b16 %v1341
        %v1357 = vunpack.c.l.b16 %v1342
        %v1358 = vunpack.c.l.b16 %v1343
        %v1359 = vunpack.c.l.b16 %v1344
        %v1360 = vpack.c.b16 %v1357, %v1356
        %v1361 = vpack.c.b16 %v1359, %v1358
        %v1365 = vsel %vm372, %v1337, 0
        %v1368 = vsel %vm372, %v1338, 0
        %v1371 = vsel %vm372, %v1339, 0
        %v1374 = vsel %vm372, %v1340, 0
        %1376 = vmatprep.subr.bf16.mxu0 0
        %1377 = vmatpush1.bf16.msra.mxu0 %v1360
        %1378 = vmatprep.subr.bf16.mxu0 0
        %1379 = vmatpush1.bf16.msra.mxu0 %v1361
        %1380 = vmatprep.subr.bf16.mxu0 0
        %1381 = vmatpush1.bf16.msra.mxu0 0
        %1382 = vmatprep.subr.bf16.mxu0 0
        %1383 = vmatpush1.bf16.msra.mxu0 0
        %1384 = vmatprep.subr.bf16.mxu0 0
        %1385 = vmatpush1.bf16.msra.mxu0 0
        %1386 = vmatprep.subr.bf16.mxu0 0
        %1387 = vmatpush1.bf16.msra.mxu0 0
        %1388 = vmatprep.subr.bf16.mxu0 0
        %1389 = vmatpush1.bf16.msra.mxu0 0
        %1390 = vmatprep.subr.bf16.mxu0 0
        %1391 = vmatpush1.bf16.msra.mxu0 0
        %1392 = vmatprep.subr.bf16.mxu0 0
        %1393 = vmatpush1.bf16.msra.mxu0 0
        %1394 = vmatprep.subr.bf16.mxu0 0
        %1395 = vmatpush1.bf16.msra.mxu0 0
        %1396 = vmatprep.subr.bf16.mxu0 0
        %1397 = vmatpush1.bf16.msra.mxu0 0
        %1398 = vmatprep.subr.bf16.mxu0 0
        %1399 = vmatpush1.bf16.msra.mxu0 0
        %1400 = vmatprep.subr.bf16.mxu0 0
        %1401 = vmatpush1.bf16.msra.mxu0 0
        %1402 = vmatprep.subr.bf16.mxu0 0
        %1403 = vmatpush1.bf16.msra.mxu0 0
        %1404 = vmatprep.subr.bf16.mxu0 0
        %1405 = vmatpush1.bf16.msra.mxu0 0
        %1406 = vmatprep.subr.bf16.mxu0 0
        %1407 = vmatpush1.bf16.msra.mxu0 0
        %1408 = vmatprep.mubr.bf16.mxu0 0
        %1409 = vmatmul.mubr.bf16.gmra.mrb[0].mxu0 %v1365
        %v1410 = vpop.f32.mrb[0].mxu0
        %v1411 = vadd.f32 %v1350, %v1410
        %v1412 = vpop.f32.mrb[0].mxu0
        %v1413 = vpop.f32.mrb[0].mxu0
        %v1414 = vadd.f32 %v1350, %v1413
        %v1415 = vpop.f32.mrb[0].mxu0
        %1416 = vmatprep.mubr.bf16.mxu0 0
        %1417 = vmatmul.mubr.bf16.gmra.mrb[0].mxu0 %v1368
        %v1418 = vpop.f32.mrb[0].mxu0
        %v1419 = vadd.f32 %v1350, %v1418
        %v1420 = vpop.f32.mrb[0].mxu0
        %v1421 = vpop.f32.mrb[0].mxu0
        %v1422 = vadd.f32 %v1350, %v1421
        %v1423 = vpop.f32.mrb[0].mxu0
        %1424 = vmatprep.mubr.bf16.mxu0 0
        %1425 = vmatmul.mubr.bf16.gmra.mrb[0].mxu0 %v1371
        %v1426 = vpop.f32.mrb[0].mxu0
        %v1427 = vadd.f32 %v1350, %v1426
        %v1428 = vpop.f32.mrb[0].mxu0
        %v1429 = vpop.f32.mrb[0].mxu0
        %v1430 = vadd.f32 %v1350, %v1429
        %v1431 = vpop.f32.mrb[0].mxu0
        %1432 = vmatprep.mubr.bf16.mxu0 0
        %1433 = vmatmul.mubr.bf16.gmra.mrb[0].mxu0 %v1374
        %v1434 = vpop.f32.mrb[0].mxu0
        %v1435 = vadd.f32 %v1350, %v1434
        %v1436 = vpop.f32.mrb[0].mxu0
        %v1437 = vpop.f32.mrb[0].mxu0
        %v1438 = vadd.f32 %v1350, %v1437
        %v1439 = vpop.f32.mrb[0].mxu0
        %1440 = vdwg.mxu0
        %1441 = vst.msk [vmem:[%s242] sm:$0xff] %vm989, %v1411
        %1442 = vst.msk [vmem:[%s242 + $0x8] sm:$0xff] %vm989, %v1414
        %1443 = vst.msk [vmem:[%s242 + $0x10] sm:$0xff] %vm989, %v1419
        %1444 = vst.msk [vmem:[%s242 + $0x18] sm:$0xff] %vm989, %v1422
        %1445 = vst.msk [vmem:[%s242 + $0x20] sm:$0xff] %vm989, %v1427
        %1446 = vst.msk [vmem:[%s242 + $0x28] sm:$0xff] %vm989, %v1430
        %1447 = vst.msk [vmem:[%s242 + $0x30] sm:$0xff] %vm989, %v1435
        %1448 = vst.msk [vmem:[%s242 + $0x38] sm:$0xff] %vm989, %v1438
        %s1449 = sand.u32 %s140, 1
        %s1450 = scalar_lea.sflag [#allocation5], %s1449
        %s1451 = sand.u32 %s140, 1
        %s1452 = smul.addr %s1451, 64
        %s1453 = scalar_lea.vmem [#allocation6], %s1452
        // Predicated region
        $region45: #{tpu_custom_call.1} parent=39 // pred_check
          %p1454 = pneg %p150
        $region46: #{tpu_custom_call.1} parent=39 // pred_check_branch
          %1456 = sbr.rel (%p1454) target = $region48
        $region47: #{tpu_custom_call.1} parent=39 // pred_region
          %s1458 = ssub.s32 1024, 1024
          %1459 = vsyncadd %s1450, %s1458
          %s1460 = smul.addr %s22, 8
          %s1461 = smul.addr %s1460, 128
          %s1462 = scalar_lea.hbm %s5, %s1461
          %s1463 = sshll.u32 %s1453, 4
          %s1464 = int_to_ptr.vmem [resolvable:$true] %s1463
          %1469 = dma.vmem_to_hbm [thread:$0]  %s1464, 1024, %s1462, %s1450, 128, 128, 8
        $region48: #{tpu_custom_call.1} parent=39 // pred_fallthru
          _
      $region40: #{tpu_custom_call.1} parent=5 // pred_fallthru
        _
      %p1470 = scmp.le.s32.totalorder 2, %s17
      // Predicated region
      $region49: #{tpu_custom_call.1} parent=5 // pred_check
        %p1471 = pneg %p1470
      $region50: #{tpu_custom_call.1} parent=5 // pred_check_branch
        %1473 = sbr.rel (%p1471) target = $region52
      $region51: #{tpu_custom_call.1} parent=5 // pred_region
        %s1474 = ssub.s32 %s17, 2
        // Predicated region
        $region53: #{tpu_custom_call.1} parent=51 // pred_check
          %p1475 = pneg %p156
        $region54: #{tpu_custom_call.1} parent=51 // pred_check_branch
          %1477 = sbr.rel (%p1475) target = $region56
        $region55: #{tpu_custom_call.1} parent=51 // pred_region
          %s1478 = sand.u32 %s141, 1
          %s1479 = scalar_lea.sflag [#allocation5], %s1478
          %s1480 = sand.u32 %s141, 1
          %s1481 = smul.addr %s1480, 64
          %s1482 = scalar_lea.vmem [#allocation6], %s1481
          %1483 = dma.done %s1479, 1024
        $region56: #{tpu_custom_call.1} parent=51 // pred_fallthru
          _
      $region52: #{tpu_custom_call.1} parent=5 // pred_fallthru
        _
    $region6: #{tpu_custom_call.1} parent=1 // loop_footer
      %s21 = sadd.s32 1, %s17
    $region7: #{tpu_custom_call.1} parent=1 // loop_footer_branch
      %16 = sbr.rel target = $region3
    $region8: #{tpu_custom_call.1} parent=1 // loop_exit
      _
    %1484 = vsyncpa [#allocation4], 1
    %s1485 = scalar_lea.sflag [#allocation4], 1
    %1486 = vsyncpa %s1485, 1
    %1487 = vsyncpa [#allocation5], 1
    %s1488 = scalar_lea.sflag [#allocation5], 1
    %1489 = vsyncpa %s1488, 1

</llo_original>
